<compile_context>
chip_gen: v5e
topology: v5e:2x2
jax: 0.10.0
libtpu: 0.0.40
codegen_flags: <defaults>
</compile_context>

<pallas_src>
import functools

import jax
import jax.numpy as jnp
from jax.experimental import pallas as pl
from jax.experimental.pallas import tpu as pltpu


def _encoder_kernel(*refs, n_layers, tc_len, hid_dim):
    """Fused multi-layer LSTM. Grid = (T // Tc,); one time-chunk per grid step.

    refs layout:
      [0]                      x_ref     (Tc, B, E)  bf16
      [1 .. 3*n_layers]        per layer: w_ih_t (in,4H) bf16, w_hh_t (H,4H) bf16,
                                          bias (1,4H) f32
      [1+3L, 2+3L]             hid_ref, cell_ref  (n_layers, B, H) f32
      [3+3L ..]                h_scr, c_scr (n_layers,B,H) f32, y_buf (Tc,B,H) f32
    """
    Tc = tc_len
    H = hid_dim

    x_ref = refs[0]
    w_refs = refs[1:1 + 3 * n_layers]
    hid_ref, cell_ref = refs[1 + 3 * n_layers: 3 + 3 * n_layers]
    h_scr, c_scr, y_buf = refs[3 + 3 * n_layers:]

    t = pl.program_id(0)

    @pl.when(t == 0)
    def _():
        h_scr[...] = jnp.zeros_like(h_scr)
        c_scr[...] = jnp.zeros_like(c_scr)

    for l in range(n_layers):
        w_ih = w_refs[3 * l][...]        # (in_dim, 4H) bf16
        w_hh = w_refs[3 * l + 1][...]    # (H, 4H)      bf16
        bias = w_refs[3 * l + 2][...]    # (1, 4H)      f32

        if l == 0:
            x_in = x_ref[...]                              # (Tc, B, E) bf16
        else:
            x_in = y_buf[...].astype(jnp.bfloat16)         # (Tc, B, H) bf16

        B = x_in.shape[1]
        in_dim = x_in.shape[2]

        # Batched input projection for the whole chunk (one MXU-friendly matmul).
        xp = jnp.dot(x_in.reshape(Tc * B, in_dim), w_ih,
                     preferred_element_type=jnp.float32) + bias    # (Tc*B, 4H) f32
        xp = xp.reshape(Tc, B, 4 * H)

        h = h_scr[l]                     # (B, H) f32
        c = c_scr[l]                     # (B, H) f32

        # Sequential recurrence over the chunk (statically unrolled; Tc is small).
        for i in range(Tc):
            gates = xp[i] + jnp.dot(h.astype(jnp.bfloat16), w_hh,
                                    preferred_element_type=jnp.float32)  # (B, 4H)
            # PyTorch gate order: [i, f, g, o]
            i_g = jax.nn.sigmoid(gates[:, 0 * H:1 * H])
            f_g = jax.nn.sigmoid(gates[:, 1 * H:2 * H])
            g_g = jnp.tanh(gates[:, 2 * H:3 * H])
            o_g = jax.nn.sigmoid(gates[:, 3 * H:4 * H])

            c = f_g * c + i_g * g_g
            h = o_g * jnp.tanh(c)

            if l < n_layers - 1:
                y_buf[i] = h             # feed next layer; last layer's seq unused

        h_scr[l] = h
        c_scr[l] = c

    @pl.when(t == pl.num_programs(0) - 1)
    def _():
        hid_ref[...] = h_scr[...]
        cell_ref[...] = c_scr[...]


def _pick_time_chunk(T, cap=8):
    for tc in range(min(T, cap), 0, -1):
        if T % tc == 0:
            return tc
    return 1


def encoder_forward(params, src, *, time_chunk=None):
    """src: (B, T) int32 token ids (batch_first, like the PyTorch module).

    Returns (hidden, cell), each (n_layers, B, H) float32 — same as nn.LSTM.
    """
    emb = params["embedding"]                       # (V, E) f32
    # Gather directly into time-major layout; dropout is identity in eval mode.
    # TODO(synk): training-mode dropout (random masking) not implemented.
    x = jnp.take(emb, src.T, axis=0).astype(jnp.bfloat16)   # (T, B, E)
    T, B, E = x.shape

    layers = params["lstm"]
    n_layers = len(layers)
    H = layers[0]["w_hh_t"].shape[0]

    Tc = time_chunk if time_chunk is not None else _pick_time_chunk(T)
    assert T % Tc == 0, "time_chunk must divide the sequence length"
    grid = (T // Tc,)

    flat_weights = []
    in_specs = [pl.BlockSpec((Tc, B, E), lambda t: (t, 0, 0))]     # x chunk
    for lp in layers:
        in_dim = lp["w_ih_t"].shape[0]
        flat_weights += [lp["w_ih_t"], lp["w_hh_t"], lp["bias"]]
        in_specs += [
            pl.BlockSpec((in_dim, 4 * H), lambda t: (0, 0)),       # W_ih^T (resident)
            pl.BlockSpec((H, 4 * H), lambda t: (0, 0)),            # W_hh^T (resident)
            pl.BlockSpec((1, 4 * H), lambda t: (0, 0)),            # merged bias
        ]

    out_specs = [
        pl.BlockSpec((n_layers, B, H), lambda t: (0, 0, 0)),       # final hidden
        pl.BlockSpec((n_layers, B, H), lambda t: (0, 0, 0)),       # final cell
    ]
    out_shapes = (
        jax.ShapeDtypeStruct((n_layers, B, H), jnp.float32),
        jax.ShapeDtypeStruct((n_layers, B, H), jnp.float32),
    )

    scratch_shapes = [
        pltpu.VMEM((n_layers, B, H), jnp.float32),   # h carry (per layer)
        pltpu.VMEM((n_layers, B, H), jnp.float32),   # c carry (per layer)
        pltpu.VMEM((Tc, B, H), jnp.float32),         # inter-layer chunk buffer
    ]

    kernel = functools.partial(_encoder_kernel, n_layers=n_layers,
                               tc_len=Tc, hid_dim=H)

    hidden, cell = pl.pallas_call(
        kernel,
        out_shape=out_shapes,
        grid_spec=pltpu.PrefetchScalarGridSpec(
            num_scalar_prefetch=0,
            grid=grid,
            in_specs=in_specs,
            out_specs=out_specs,
            scratch_shapes=scratch_shapes),
        compiler_params=pltpu.CompilerParams(
            dimension_semantics=("arbitrary",)),     # time recurrence is sequential
    )(x, *flat_weights)
    return hidden, cell


def init_encoder_params(key, input_dim, emb_dim, hid_dim, n_layers):
    """Deterministic init matching the PyTorch module's parameterization.

    Weights are stored pre-transposed ((in,4H)/(H,4H)) in bf16 and the two LSTM
    biases are merged, per the performance review.
    """
    params = {}
    k_emb, key = jax.random.split(key)
    params["embedding"] = jax.random.normal(
        k_emb, (input_dim, emb_dim), dtype=jnp.float32)

    bound = 1.0 / float(jnp.sqrt(hid_dim))
    layers = []
    for layer in range(n_layers):
        in_dim = emb_dim if layer == 0 else hid_dim
        k1, k2, k3, k4, key = jax.random.split(key, 5)
        w_ih = jax.random.uniform(k1, (4 * hid_dim, in_dim),
                                  minval=-bound, maxval=bound, dtype=jnp.float32)
        w_hh = jax.random.uniform(k2, (4 * hid_dim, hid_dim),
                                  minval=-bound, maxval=bound, dtype=jnp.float32)
        b_ih = jax.random.uniform(k3, (4 * hid_dim,),
                                  minval=-bound, maxval=bound, dtype=jnp.float32)
        b_hh = jax.random.uniform(k4, (4 * hid_dim,),
                                  minval=-bound, maxval=bound, dtype=jnp.float32)
        layers.append({
            "w_ih_t": w_ih.T.astype(jnp.bfloat16),          # (in_dim, 4H)
            "w_hh_t": w_hh.T.astype(jnp.bfloat16),          # (H, 4H)
            "bias": (b_ih + b_hh).reshape(1, 4 * hid_dim),  # (1, 4H) f32
        })
    params["lstm"] = layers
    return params


def _reference_forward(params, src):
    """Pure-JAX LSTM reference (bf16 matmul operands, f32 state) for validation."""
    emb = params["embedding"]
    x = jnp.take(emb, src.T, axis=0).astype(jnp.bfloat16)   # (T, B, E)
    T, B, _ = x.shape
    hiddens, cells = [], []
    for lp in params["lstm"]:
        H = lp["w_hh_t"].shape[0]
        h = jnp.zeros((B, H), jnp.float32)
        c = jnp.zeros((B, H), jnp.float32)
        ys = []
        for t in range(T):
            gates = (jnp.dot(x[t], lp["w_ih_t"], preferred_element_type=jnp.float32)
                     + jnp.dot(h.astype(jnp.bfloat16), lp["w_hh_t"],
                               preferred_element_type=jnp.float32)
                     + lp["bias"])
            i_g = jax.nn.sigmoid(gates[:, 0 * H:1 * H])
            f_g = jax.nn.sigmoid(gates[:, 1 * H:2 * H])
            g_g = jnp.tanh(gates[:, 2 * H:3 * H])
            o_g = jax.nn.sigmoid(gates[:, 3 * H:4 * H])
            c = f_g * c + i_g * g_g
            h = o_g * jnp.tanh(c)
            ys.append(h)
        hiddens.append(h)
        cells.append(c)
        x = jnp.stack(ys, axis=0).astype(jnp.bfloat16)
    return jnp.stack(hiddens, 0), jnp.stack(cells, 0)


if __name__ == "__main__":
    INPUT_DIM = 20     # vocab size
    EMB_DIM = 16
    HID_DIM = 32
    N_LAYERS = 2
    BATCH = 2
    SEQ_LEN = 8

    key = jax.random.PRNGKey(0)
    k_params, k_src = jax.random.split(key)

    params = init_encoder_params(k_params, INPUT_DIM, EMB_DIM, HID_DIM, N_LAYERS)
    src = jax.random.randint(k_src, (BATCH, SEQ_LEN), 0, INPUT_DIM, dtype=jnp.int32)

    # time_chunk=4 -> grid of 2 chunks, exercising the cross-chunk h/c carry.
    hidden, cell = encoder_forward(params, src, time_chunk=4)
    jax.block_until_ready((hidden, cell))

    assert hidden.shape == (N_LAYERS, BATCH, HID_DIM)
    assert cell.shape == (N_LAYERS, BATCH, HID_DIM)

    ref_h, ref_c = _reference_forward(params, src)
    max_err = max(float(jnp.max(jnp.abs(hidden - ref_h))),
                  float(jnp.max(jnp.abs(cell - ref_c))))
    assert max_err < 1e-1, f"mismatch vs reference: {max_err}"

    print("KERNEL_OK")
</pallas_src>

<mosaic_0001>
module attributes {stable_mosaic.version = 11 : i64} {
  func.func @_encoder_kernel(%arg0: i32, %arg1: memref<4x2x16xbf16, #tpu.memory_space<vmem>>, %arg2: memref<16x128xbf16, #tpu.memory_space<vmem>>, %arg3: memref<32x128xbf16, #tpu.memory_space<vmem>>, %arg4: memref<1x128xf32, #tpu.memory_space<vmem>>, %arg5: memref<32x128xbf16, #tpu.memory_space<vmem>>, %arg6: memref<32x128xbf16, #tpu.memory_space<vmem>>, %arg7: memref<1x128xf32, #tpu.memory_space<vmem>>, %arg8: memref<2x2x32xf32, #tpu.memory_space<vmem>>, %arg9: memref<2x2x32xf32, #tpu.memory_space<vmem>>, %arg10: memref<2x2x32xf32, #tpu.memory_space<vmem>>, %arg11: memref<2x2x32xf32, #tpu.memory_space<vmem>>, %arg12: memref<4x2x32xf32, #tpu.memory_space<vmem>>) attributes {dimension_semantics = [#tpu.dimension_semantics<arbitrary>], iteration_bounds = array<i64: 2>, scalar_prefetch = 0 : i64, scratch_operands = 3 : i64, tpu.core_type = #tpu.core_type<tc>, window_params = [{transform_indices = @transform_0, window_bounds = array<i64: 4, 2, 16>}, {pipeline_mode = #tpu.pipeline_mode<synchronous>, transform_indices = @transform_1, window_bounds = array<i64: 16, 128>}, {pipeline_mode = #tpu.pipeline_mode<synchronous>, transform_indices = @transform_2, window_bounds = array<i64: 32, 128>}, {pipeline_mode = #tpu.pipeline_mode<synchronous>, transform_indices = @transform_3, window_bounds = array<i64: 1, 128>}, {pipeline_mode = #tpu.pipeline_mode<synchronous>, transform_indices = @transform_4, window_bounds = array<i64: 32, 128>}, {pipeline_mode = #tpu.pipeline_mode<synchronous>, transform_indices = @transform_5, window_bounds = array<i64: 32, 128>}, {pipeline_mode = #tpu.pipeline_mode<synchronous>, transform_indices = @transform_6, window_bounds = array<i64: 1, 128>}, {pipeline_mode = #tpu.pipeline_mode<synchronous>, transform_indices = @transform_7, window_bounds = array<i64: 2, 2, 32>}, {pipeline_mode = #tpu.pipeline_mode<synchronous>, transform_indices = @transform_8, window_bounds = array<i64: 2, 2, 32>}]} {
    %c0_i32 = arith.constant 0 : i32
    %0 = arith.cmpi eq, %arg0, %c0_i32 : i32
    %1 = arith.extui %0 : i1 to i32
    %c0_i32_0 = arith.constant 0 : i32
    %2 = arith.cmpi ne, %1, %c0_i32_0 : i32
    scf.if %2 {
      %cst_85 = arith.constant 0.000000e+00 : f32
      %297 = vector.broadcast %cst_85 : f32 to vector<2x2x32xf32>
      %c0_86 = arith.constant 0 : index
      %c0_87 = arith.constant 0 : index
      %c0_88 = arith.constant 0 : index
      %298 = vector.load %arg10[%c0_86, %c0_87, %c0_88] : memref<2x2x32xf32, #tpu.memory_space<vmem>>, vector<2x2x32xf32>
      tpu.vector_store %arg10[%c0_86, %c0_87, %c0_88], %297 {strides = array<i32>} : memref<2x2x32xf32, #tpu.memory_space<vmem>>, vector<2x2x32xf32>,
      %cst_89 = arith.constant 0.000000e+00 : f32
      %299 = vector.broadcast %cst_89 : f32 to vector<2x2x32xf32>
      %c0_90 = arith.constant 0 : index
      %c0_91 = arith.constant 0 : index
      %c0_92 = arith.constant 0 : index
      %300 = vector.load %arg11[%c0_90, %c0_91, %c0_92] : memref<2x2x32xf32, #tpu.memory_space<vmem>>, vector<2x2x32xf32>
      tpu.vector_store %arg11[%c0_90, %c0_91, %c0_92], %299 {strides = array<i32>} : memref<2x2x32xf32, #tpu.memory_space<vmem>>, vector<2x2x32xf32>,
    } else {
    }
    %c0 = arith.constant 0 : index
    %c0_1 = arith.constant 0 : index
    %3 = vector.load %arg2[%c0, %c0_1] : memref<16x128xbf16, #tpu.memory_space<vmem>>, vector<16x128xbf16>
    %c0_2 = arith.constant 0 : index
    %c0_3 = arith.constant 0 : index
    %4 = vector.load %arg3[%c0_2, %c0_3] : memref<32x128xbf16, #tpu.memory_space<vmem>>, vector<32x128xbf16>
    %c0_4 = arith.constant 0 : index
    %c0_5 = arith.constant 0 : index
    %5 = vector.load %arg4[%c0_4, %c0_5] : memref<1x128xf32, #tpu.memory_space<vmem>>, vector<1x128xf32>
    %c0_6 = arith.constant 0 : index
    %c0_7 = arith.constant 0 : index
    %c0_8 = arith.constant 0 : index
    %6 = vector.load %arg1[%c0_6, %c0_7, %c0_8] : memref<4x2x16xbf16, #tpu.memory_space<vmem>>, vector<4x2x16xbf16>
    %7 = vector.shape_cast %6 : vector<4x2x16xbf16> to vector<8x16xbf16>
    %cst = arith.constant dense<0.000000e+00> : vector<8x128xf32>
    %8 = tpu.matmul %7, %3, %cst {dimension_numbers = #tpu.dot_dimension_numbers<[1], [0], [0], [1], [0, 0, 1, 1], [], []>} : vector<8x16xbf16>, vector<16x128xbf16>, vector<8x128xf32> -> vector<8x128xf32>
    %9 = vector.broadcast %5 : vector<1x128xf32> to vector<8x128xf32>
    %10 = arith.addf %8, %9 : vector<8x128xf32>
    %11 = vector.shape_cast %10 : vector<8x128xf32> to vector<4x2x128xf32>
    %c0_9 = arith.constant 0 : index
    %c0_10 = arith.constant 0 : index
    %c0_11 = arith.constant 0 : index
    %12 = vector.load %arg10[%c0_9, %c0_10, %c0_11] : memref<2x2x32xf32, #tpu.memory_space<vmem>>, vector<1x2x32xf32>
    %13 = vector.shape_cast %12 : vector<1x2x32xf32> to vector<2x32xf32>
    %c0_12 = arith.constant 0 : index
    %c0_13 = arith.constant 0 : index
    %c0_14 = arith.constant 0 : index
    %14 = vector.load %arg11[%c0_12, %c0_13, %c0_14] : memref<2x2x32xf32, #tpu.memory_space<vmem>>, vector<1x2x32xf32>
    %15 = vector.shape_cast %14 : vector<1x2x32xf32> to vector<2x32xf32>
    %16 = vector.extract_strided_slice %11 {offsets = [0, 0, 0], sizes = [1, 2, 128], strides = [1, 1, 1]} : vector<4x2x128xf32> to vector<1x2x128xf32>
    %17 = vector.shape_cast %16 : vector<1x2x128xf32> to vector<2x128xf32>
    %18 = arith.truncf %13 : vector<2x32xf32> to vector<2x32xbf16>
    %cst_15 = arith.constant dense<0.000000e+00> : vector<2x128xf32>
    %19 = tpu.matmul %18, %4, %cst_15 {dimension_numbers = #tpu.dot_dimension_numbers<[1], [0], [0], [1], [0, 0, 1, 1], [], []>} : vector<2x32xbf16>, vector<32x128xbf16>, vector<2x128xf32> -> vector<2x128xf32>
    %20 = arith.addf %17, %19 : vector<2x128xf32>
    %21 = vector.extract_strided_slice %20 {offsets = [0, 0], sizes = [2, 32], strides = [1, 1]} : vector<2x128xf32> to vector<2x32xf32>
    %22 = arith.negf %21 : vector<2x32xf32>
    %23 = math.exp %22 : vector<2x32xf32>
    %cst_16 = arith.constant 1.000000e+00 : f32
    %24 = vector.broadcast %cst_16 : f32 to vector<2x32xf32>
    %25 = arith.addf %24, %23 : vector<2x32xf32>
    %26 = arith.divf %24, %25 : vector<2x32xf32>
    %27 = vector.extract_strided_slice %20 {offsets = [0, 32], sizes = [2, 32], strides = [1, 1]} : vector<2x128xf32> to vector<2x32xf32>
    %28 = arith.negf %27 : vector<2x32xf32>
    %29 = math.exp %28 : vector<2x32xf32>
    %cst_17 = arith.constant 1.000000e+00 : f32
    %30 = vector.broadcast %cst_17 : f32 to vector<2x32xf32>
    %31 = arith.addf %30, %29 : vector<2x32xf32>
    %32 = arith.divf %30, %31 : vector<2x32xf32>
    %33 = vector.extract_strided_slice %20 {offsets = [0, 64], sizes = [2, 32], strides = [1, 1]} : vector<2x128xf32> to vector<2x32xf32>
    %34 = math.tanh %33 : vector<2x32xf32>
    %35 = vector.extract_strided_slice %20 {offsets = [0, 96], sizes = [2, 32], strides = [1, 1]} : vector<2x128xf32> to vector<2x32xf32>
    %36 = arith.negf %35 : vector<2x32xf32>
    %37 = math.exp %36 : vector<2x32xf32>
    %cst_18 = arith.constant 1.000000e+00 : f32
    %38 = vector.broadcast %cst_18 : f32 to vector<2x32xf32>
    %39 = arith.addf %38, %37 : vector<2x32xf32>
    %40 = arith.divf %38, %39 : vector<2x32xf32>
    %41 = arith.mulf %32, %15 : vector<2x32xf32>
    %42 = arith.mulf %26, %34 : vector<2x32xf32>
    %43 = arith.addf %41, %42 : vector<2x32xf32>
    %44 = math.tanh %43 : vector<2x32xf32>
    %45 = arith.mulf %40, %44 : vector<2x32xf32>
    %c0_19 = arith.constant 0 : index
    %c0_20 = arith.constant 0 : index
    %c0_21 = arith.constant 0 : index
    %46 = vector.load %arg12[%c0_19, %c0_20, %c0_21] : memref<4x2x32xf32, #tpu.memory_space<vmem>>, vector<1x2x32xf32>
    %47 = vector.shape_cast %46 : vector<1x2x32xf32> to vector<2x32xf32>
    %48 = vector.shape_cast %45 : vector<2x32xf32> to vector<1x2x32xf32>
    tpu.vector_store %arg12[%c0_19, %c0_20, %c0_21], %48 {strides = array<i32>} : memref<4x2x32xf32, #tpu.memory_space<vmem>>, vector<1x2x32xf32>,
    %49 = vector.extract_strided_slice %11 {offsets = [1, 0, 0], sizes = [1, 2, 128], strides = [1, 1, 1]} : vector<4x2x128xf32> to vector<1x2x128xf32>
    %50 = vector.shape_cast %49 : vector<1x2x128xf32> to vector<2x128xf32>
    %51 = arith.truncf %45 : vector<2x32xf32> to vector<2x32xbf16>
    %cst_22 = arith.constant dense<0.000000e+00> : vector<2x128xf32>
    %52 = tpu.matmul %51, %4, %cst_22 {dimension_numbers = #tpu.dot_dimension_numbers<[1], [0], [0], [1], [0, 0, 1, 1], [], []>} : vector<2x32xbf16>, vector<32x128xbf16>, vector<2x128xf32> -> vector<2x128xf32>
    %53 = arith.addf %50, %52 : vector<2x128xf32>
    %54 = vector.extract_strided_slice %53 {offsets = [0, 0], sizes = [2, 32], strides = [1, 1]} : vector<2x128xf32> to vector<2x32xf32>
    %55 = arith.negf %54 : vector<2x32xf32>
    %56 = math.exp %55 : vector<2x32xf32>
    %cst_23 = arith.constant 1.000000e+00 : f32
    %57 = vector.broadcast %cst_23 : f32 to vector<2x32xf32>
    %58 = arith.addf %57, %56 : vector<2x32xf32>
    %59 = arith.divf %57, %58 : vector<2x32xf32>
    %60 = vector.extract_strided_slice %53 {offsets = [0, 32], sizes = [2, 32], strides = [1, 1]} : vector<2x128xf32> to vector<2x32xf32>
    %61 = arith.negf %60 : vector<2x32xf32>
    %62 = math.exp %61 : vector<2x32xf32>
    %cst_24 = arith.constant 1.000000e+00 : f32
    %63 = vector.broadcast %cst_24 : f32 to vector<2x32xf32>
    %64 = arith.addf %63, %62 : vector<2x32xf32>
    %65 = arith.divf %63, %64 : vector<2x32xf32>
    %66 = vector.extract_strided_slice %53 {offsets = [0, 64], sizes = [2, 32], strides = [1, 1]} : vector<2x128xf32> to vector<2x32xf32>
    %67 = math.tanh %66 : vector<2x32xf32>
    %68 = vector.extract_strided_slice %53 {offsets = [0, 96], sizes = [2, 32], strides = [1, 1]} : vector<2x128xf32> to vector<2x32xf32>
    %69 = arith.negf %68 : vector<2x32xf32>
    %70 = math.exp %69 : vector<2x32xf32>
    %cst_25 = arith.constant 1.000000e+00 : f32
    %71 = vector.broadcast %cst_25 : f32 to vector<2x32xf32>
    %72 = arith.addf %71, %70 : vector<2x32xf32>
    %73 = arith.divf %71, %72 : vector<2x32xf32>
    %74 = arith.mulf %65, %43 : vector<2x32xf32>
    %75 = arith.mulf %59, %67 : vector<2x32xf32>
    %76 = arith.addf %74, %75 : vector<2x32xf32>
    %77 = math.tanh %76 : vector<2x32xf32>
    %78 = arith.mulf %73, %77 : vector<2x32xf32>
    %c1 = arith.constant 1 : index
    %c0_26 = arith.constant 0 : index
    %c0_27 = arith.constant 0 : index
    %79 = vector.load %arg12[%c1, %c0_26, %c0_27] : memref<4x2x32xf32, #tpu.memory_space<vmem>>, vector<1x2x32xf32>
    %80 = vector.shape_cast %79 : vector<1x2x32xf32> to vector<2x32xf32>
    %81 = vector.shape_cast %78 : vector<2x32xf32> to vector<1x2x32xf32>
    tpu.vector_store %arg12[%c1, %c0_26, %c0_27], %81 {strides = array<i32>} : memref<4x2x32xf32, #tpu.memory_space<vmem>>, vector<1x2x32xf32>,
    %82 = vector.extract_strided_slice %11 {offsets = [2, 0, 0], sizes = [1, 2, 128], strides = [1, 1, 1]} : vector<4x2x128xf32> to vector<1x2x128xf32>
    %83 = vector.shape_cast %82 : vector<1x2x128xf32> to vector<2x128xf32>
    %84 = arith.truncf %78 : vector<2x32xf32> to vector<2x32xbf16>
    %cst_28 = arith.constant dense<0.000000e+00> : vector<2x128xf32>
    %85 = tpu.matmul %84, %4, %cst_28 {dimension_numbers = #tpu.dot_dimension_numbers<[1], [0], [0], [1], [0, 0, 1, 1], [], []>} : vector<2x32xbf16>, vector<32x128xbf16>, vector<2x128xf32> -> vector<2x128xf32>
    %86 = arith.addf %83, %85 : vector<2x128xf32>
    %87 = vector.extract_strided_slice %86 {offsets = [0, 0], sizes = [2, 32], strides = [1, 1]} : vector<2x128xf32> to vector<2x32xf32>
    %88 = arith.negf %87 : vector<2x32xf32>
    %89 = math.exp %88 : vector<2x32xf32>
    %cst_29 = arith.constant 1.000000e+00 : f32
    %90 = vector.broadcast %cst_29 : f32 to vector<2x32xf32>
    %91 = arith.addf %90, %89 : vector<2x32xf32>
    %92 = arith.divf %90, %91 : vector<2x32xf32>
    %93 = vector.extract_strided_slice %86 {offsets = [0, 32], sizes = [2, 32], strides = [1, 1]} : vector<2x128xf32> to vector<2x32xf32>
    %94 = arith.negf %93 : vector<2x32xf32>
    %95 = math.exp %94 : vector<2x32xf32>
    %cst_30 = arith.constant 1.000000e+00 : f32
    %96 = vector.broadcast %cst_30 : f32 to vector<2x32xf32>
    %97 = arith.addf %96, %95 : vector<2x32xf32>
    %98 = arith.divf %96, %97 : vector<2x32xf32>
    %99 = vector.extract_strided_slice %86 {offsets = [0, 64], sizes = [2, 32], strides = [1, 1]} : vector<2x128xf32> to vector<2x32xf32>
    %100 = math.tanh %99 : vector<2x32xf32>
    %101 = vector.extract_strided_slice %86 {offsets = [0, 96], sizes = [2, 32], strides = [1, 1]} : vector<2x128xf32> to vector<2x32xf32>
    %102 = arith.negf %101 : vector<2x32xf32>
    %103 = math.exp %102 : vector<2x32xf32>
    %cst_31 = arith.constant 1.000000e+00 : f32
    %104 = vector.broadcast %cst_31 : f32 to vector<2x32xf32>
    %105 = arith.addf %104, %103 : vector<2x32xf32>
    %106 = arith.divf %104, %105 : vector<2x32xf32>
    %107 = arith.mulf %98, %76 : vector<2x32xf32>
    %108 = arith.mulf %92, %100 : vector<2x32xf32>
    %109 = arith.addf %107, %108 : vector<2x32xf32>
    %110 = math.tanh %109 : vector<2x32xf32>
    %111 = arith.mulf %106, %110 : vector<2x32xf32>
    %c2 = arith.constant 2 : index
    %c0_32 = arith.constant 0 : index
    %c0_33 = arith.constant 0 : index
    %112 = vector.load %arg12[%c2, %c0_32, %c0_33] : memref<4x2x32xf32, #tpu.memory_space<vmem>>, vector<1x2x32xf32>
    %113 = vector.shape_cast %112 : vector<1x2x32xf32> to vector<2x32xf32>
    %114 = vector.shape_cast %111 : vector<2x32xf32> to vector<1x2x32xf32>
    tpu.vector_store %arg12[%c2, %c0_32, %c0_33], %114 {strides = array<i32>} : memref<4x2x32xf32, #tpu.memory_space<vmem>>, vector<1x2x32xf32>,
    %115 = vector.extract_strided_slice %11 {offsets = [3, 0, 0], sizes = [1, 2, 128], strides = [1, 1, 1]} : vector<4x2x128xf32> to vector<1x2x128xf32>
    %116 = vector.shape_cast %115 : vector<1x2x128xf32> to vector<2x128xf32>
    %117 = arith.truncf %111 : vector<2x32xf32> to vector<2x32xbf16>
    %cst_34 = arith.constant dense<0.000000e+00> : vector<2x128xf32>
    %118 = tpu.matmul %117, %4, %cst_34 {dimension_numbers = #tpu.dot_dimension_numbers<[1], [0], [0], [1], [0, 0, 1, 1], [], []>} : vector<2x32xbf16>, vector<32x128xbf16>, vector<2x128xf32> -> vector<2x128xf32>
    %119 = arith.addf %116, %118 : vector<2x128xf32>
    %120 = vector.extract_strided_slice %119 {offsets = [0, 0], sizes = [2, 32], strides = [1, 1]} : vector<2x128xf32> to vector<2x32xf32>
    %121 = arith.negf %120 : vector<2x32xf32>
    %122 = math.exp %121 : vector<2x32xf32>
    %cst_35 = arith.constant 1.000000e+00 : f32
    %123 = vector.broadcast %cst_35 : f32 to vector<2x32xf32>
    %124 = arith.addf %123, %122 : vector<2x32xf32>
    %125 = arith.divf %123, %124 : vector<2x32xf32>
    %126 = vector.extract_strided_slice %119 {offsets = [0, 32], sizes = [2, 32], strides = [1, 1]} : vector<2x128xf32> to vector<2x32xf32>
    %127 = arith.negf %126 : vector<2x32xf32>
    %128 = math.exp %127 : vector<2x32xf32>
    %cst_36 = arith.constant 1.000000e+00 : f32
    %129 = vector.broadcast %cst_36 : f32 to vector<2x32xf32>
    %130 = arith.addf %129, %128 : vector<2x32xf32>
    %131 = arith.divf %129, %130 : vector<2x32xf32>
    %132 = vector.extract_strided_slice %119 {offsets = [0, 64], sizes = [2, 32], strides = [1, 1]} : vector<2x128xf32> to vector<2x32xf32>
    %133 = math.tanh %132 : vector<2x32xf32>
    %134 = vector.extract_strided_slice %119 {offsets = [0, 96], sizes = [2, 32], strides = [1, 1]} : vector<2x128xf32> to vector<2x32xf32>
    %135 = arith.negf %134 : vector<2x32xf32>
    %136 = math.exp %135 : vector<2x32xf32>
    %cst_37 = arith.constant 1.000000e+00 : f32
    %137 = vector.broadcast %cst_37 : f32 to vector<2x32xf32>
    %138 = arith.addf %137, %136 : vector<2x32xf32>
    %139 = arith.divf %137, %138 : vector<2x32xf32>
    %140 = arith.mulf %131, %109 : vector<2x32xf32>
    %141 = arith.mulf %125, %133 : vector<2x32xf32>
    %142 = arith.addf %140, %141 : vector<2x32xf32>
    %143 = math.tanh %142 : vector<2x32xf32>
    %144 = arith.mulf %139, %143 : vector<2x32xf32>
    %c3 = arith.constant 3 : index
    %c0_38 = arith.constant 0 : index
    %c0_39 = arith.constant 0 : index
    %145 = vector.load %arg12[%c3, %c0_38, %c0_39] : memref<4x2x32xf32, #tpu.memory_space<vmem>>, vector<1x2x32xf32>
    %146 = vector.shape_cast %145 : vector<1x2x32xf32> to vector<2x32xf32>
    %147 = vector.shape_cast %144 : vector<2x32xf32> to vector<1x2x32xf32>
    tpu.vector_store %arg12[%c3, %c0_38, %c0_39], %147 {strides = array<i32>} : memref<4x2x32xf32, #tpu.memory_space<vmem>>, vector<1x2x32xf32>,
    %c0_40 = arith.constant 0 : index
    %c0_41 = arith.constant 0 : index
    %c0_42 = arith.constant 0 : index
    %148 = vector.load %arg10[%c0_40, %c0_41, %c0_42] : memref<2x2x32xf32, #tpu.memory_space<vmem>>, vector<1x2x32xf32>
    %149 = vector.shape_cast %148 : vector<1x2x32xf32> to vector<2x32xf32>
    %150 = vector.shape_cast %144 : vector<2x32xf32> to vector<1x2x32xf32>
    tpu.vector_store %arg10[%c0_40, %c0_41, %c0_42], %150 {strides = array<i32>} : memref<2x2x32xf32, #tpu.memory_space<vmem>>, vector<1x2x32xf32>,
    %c0_43 = arith.constant 0 : index
    %c0_44 = arith.constant 0 : index
    %c0_45 = arith.constant 0 : index
    %151 = vector.load %arg11[%c0_43, %c0_44, %c0_45] : memref<2x2x32xf32, #tpu.memory_space<vmem>>, vector<1x2x32xf32>
    %152 = vector.shape_cast %151 : vector<1x2x32xf32> to vector<2x32xf32>
    %153 = vector.shape_cast %142 : vector<2x32xf32> to vector<1x2x32xf32>
    tpu.vector_store %arg11[%c0_43, %c0_44, %c0_45], %153 {strides = array<i32>} : memref<2x2x32xf32, #tpu.memory_space<vmem>>, vector<1x2x32xf32>,
    %c0_46 = arith.constant 0 : index
    %c0_47 = arith.constant 0 : index
    %154 = vector.load %arg5[%c0_46, %c0_47] : memref<32x128xbf16, #tpu.memory_space<vmem>>, vector<32x128xbf16>
    %c0_48 = arith.constant 0 : index
    %c0_49 = arith.constant 0 : index
    %155 = vector.load %arg6[%c0_48, %c0_49] : memref<32x128xbf16, #tpu.memory_space<vmem>>, vector<32x128xbf16>
    %c0_50 = arith.constant 0 : index
    %c0_51 = arith.constant 0 : index
    %156 = vector.load %arg7[%c0_50, %c0_51] : memref<1x128xf32, #tpu.memory_space<vmem>>, vector<1x128xf32>
    %c0_52 = arith.constant 0 : index
    %c0_53 = arith.constant 0 : index
    %c0_54 = arith.constant 0 : index
    %157 = vector.load %arg12[%c0_52, %c0_53, %c0_54] : memref<4x2x32xf32, #tpu.memory_space<vmem>>, vector<4x2x32xf32>
    %158 = arith.truncf %157 : vector<4x2x32xf32> to vector<4x2x32xbf16>
    %159 = vector.shape_cast %158 : vector<4x2x32xbf16> to vector<8x32xbf16>
    %cst_55 = arith.constant dense<0.000000e+00> : vector<8x128xf32>
    %160 = tpu.matmul %159, %154, %cst_55 {dimension_numbers = #tpu.dot_dimension_numbers<[1], [0], [0], [1], [0, 0, 1, 1], [], []>} : vector<8x32xbf16>, vector<32x128xbf16>, vector<8x128xf32> -> vector<8x128xf32>
    %161 = vector.broadcast %156 : vector<1x128xf32> to vector<8x128xf32>
    %162 = arith.addf %160, %161 : vector<8x128xf32>
    %163 = vector.shape_cast %162 : vector<8x128xf32> to vector<4x2x128xf32>
    %c1_56 = arith.constant 1 : index
    %c0_57 = arith.constant 0 : index
    %c0_58 = arith.constant 0 : index
    %164 = vector.load %arg10[%c1_56, %c0_57, %c0_58] : memref<2x2x32xf32, #tpu.memory_space<vmem>>, vector<1x2x32xf32>
    %165 = vector.shape_cast %164 : vector<1x2x32xf32> to vector<2x32xf32>
    %c1_59 = arith.constant 1 : index
    %c0_60 = arith.constant 0 : index
    %c0_61 = arith.constant 0 : index
    %166 = vector.load %arg11[%c1_59, %c0_60, %c0_61] : memref<2x2x32xf32, #tpu.memory_space<vmem>>, vector<1x2x32xf32>
    %167 = vector.shape_cast %166 : vector<1x2x32xf32> to vector<2x32xf32>
    %168 = vector.extract_strided_slice %163 {offsets = [0, 0, 0], sizes = [1, 2, 128], strides = [1, 1, 1]} : vector<4x2x128xf32> to vector<1x2x128xf32>
    %169 = vector.shape_cast %168 : vector<1x2x128xf32> to vector<2x128xf32>
    %170 = arith.truncf %165 : vector<2x32xf32> to vector<2x32xbf16>
    %cst_62 = arith.constant dense<0.000000e+00> : vector<2x128xf32>
    %171 = tpu.matmul %170, %155, %cst_62 {dimension_numbers = #tpu.dot_dimension_numbers<[1], [0], [0], [1], [0, 0, 1, 1], [], []>} : vector<2x32xbf16>, vector<32x128xbf16>, vector<2x128xf32> -> vector<2x128xf32>
    %172 = arith.addf %169, %171 : vector<2x128xf32>
    %173 = vector.extract_strided_slice %172 {offsets = [0, 0], sizes = [2, 32], strides = [1, 1]} : vector<2x128xf32> to vector<2x32xf32>
    %174 = arith.negf %173 : vector<2x32xf32>
    %175 = math.exp %174 : vector<2x32xf32>
    %cst_63 = arith.constant 1.000000e+00 : f32
    %176 = vector.broadcast %cst_63 : f32 to vector<2x32xf32>
    %177 = arith.addf %176, %175 : vector<2x32xf32>
    %178 = arith.divf %176, %177 : vector<2x32xf32>
    %179 = vector.extract_strided_slice %172 {offsets = [0, 32], sizes = [2, 32], strides = [1, 1]} : vector<2x128xf32> to vector<2x32xf32>
    %180 = arith.negf %179 : vector<2x32xf32>
    %181 = math.exp %180 : vector<2x32xf32>
    %cst_64 = arith.constant 1.000000e+00 : f32
    %182 = vector.broadcast %cst_64 : f32 to vector<2x32xf32>
    %183 = arith.addf %182, %181 : vector<2x32xf32>
    %184 = arith.divf %182, %183 : vector<2x32xf32>
    %185 = vector.extract_strided_slice %172 {offsets = [0, 64], sizes = [2, 32], strides = [1, 1]} : vector<2x128xf32> to vector<2x32xf32>
    %186 = math.tanh %185 : vector<2x32xf32>
    %187 = vector.extract_strided_slice %172 {offsets = [0, 96], sizes = [2, 32], strides = [1, 1]} : vector<2x128xf32> to vector<2x32xf32>
    %188 = arith.negf %187 : vector<2x32xf32>
    %189 = math.exp %188 : vector<2x32xf32>
    %cst_65 = arith.constant 1.000000e+00 : f32
    %190 = vector.broadcast %cst_65 : f32 to vector<2x32xf32>
    %191 = arith.addf %190, %189 : vector<2x32xf32>
    %192 = arith.divf %190, %191 : vector<2x32xf32>
    %193 = arith.mulf %184, %167 : vector<2x32xf32>
    %194 = arith.mulf %178, %186 : vector<2x32xf32>
    %195 = arith.addf %193, %194 : vector<2x32xf32>
    %196 = math.tanh %195 : vector<2x32xf32>
    %197 = arith.mulf %192, %196 : vector<2x32xf32>
    %198 = vector.extract_strided_slice %163 {offsets = [1, 0, 0], sizes = [1, 2, 128], strides = [1, 1, 1]} : vector<4x2x128xf32> to vector<1x2x128xf32>
    %199 = vector.shape_cast %198 : vector<1x2x128xf32> to vector<2x128xf32>
    %200 = arith.truncf %197 : vector<2x32xf32> to vector<2x32xbf16>
    %cst_66 = arith.constant dense<0.000000e+00> : vector<2x128xf32>
    %201 = tpu.matmul %200, %155, %cst_66 {dimension_numbers = #tpu.dot_dimension_numbers<[1], [0], [0], [1], [0, 0, 1, 1], [], []>} : vector<2x32xbf16>, vector<32x128xbf16>, vector<2x128xf32> -> vector<2x128xf32>
    %202 = arith.addf %199, %201 : vector<2x128xf32>
    %203 = vector.extract_strided_slice %202 {offsets = [0, 0], sizes = [2, 32], strides = [1, 1]} : vector<2x128xf32> to vector<2x32xf32>
    %204 = arith.negf %203 : vector<2x32xf32>
    %205 = math.exp %204 : vector<2x32xf32>
    %cst_67 = arith.constant 1.000000e+00 : f32
    %206 = vector.broadcast %cst_67 : f32 to vector<2x32xf32>
    %207 = arith.addf %206, %205 : vector<2x32xf32>
    %208 = arith.divf %206, %207 : vector<2x32xf32>
    %209 = vector.extract_strided_slice %202 {offsets = [0, 32], sizes = [2, 32], strides = [1, 1]} : vector<2x128xf32> to vector<2x32xf32>
    %210 = arith.negf %209 : vector<2x32xf32>
    %211 = math.exp %210 : vector<2x32xf32>
    %cst_68 = arith.constant 1.000000e+00 : f32
    %212 = vector.broadcast %cst_68 : f32 to vector<2x32xf32>
    %213 = arith.addf %212, %211 : vector<2x32xf32>
    %214 = arith.divf %212, %213 : vector<2x32xf32>
    %215 = vector.extract_strided_slice %202 {offsets = [0, 64], sizes = [2, 32], strides = [1, 1]} : vector<2x128xf32> to vector<2x32xf32>
    %216 = math.tanh %215 : vector<2x32xf32>
    %217 = vector.extract_strided_slice %202 {offsets = [0, 96], sizes = [2, 32], strides = [1, 1]} : vector<2x128xf32> to vector<2x32xf32>
    %218 = arith.negf %217 : vector<2x32xf32>
    %219 = math.exp %218 : vector<2x32xf32>
    %cst_69 = arith.constant 1.000000e+00 : f32
    %220 = vector.broadcast %cst_69 : f32 to vector<2x32xf32>
    %221 = arith.addf %220, %219 : vector<2x32xf32>
    %222 = arith.divf %220, %221 : vector<2x32xf32>
    %223 = arith.mulf %214, %195 : vector<2x32xf32>
    %224 = arith.mulf %208, %216 : vector<2x32xf32>
    %225 = arith.addf %223, %224 : vector<2x32xf32>
    %226 = math.tanh %225 : vector<2x32xf32>
    %227 = arith.mulf %222, %226 : vector<2x32xf32>
    %228 = vector.extract_strided_slice %163 {offsets = [2, 0, 0], sizes = [1, 2, 128], strides = [1, 1, 1]} : vector<4x2x128xf32> to vector<1x2x128xf32>
    %229 = vector.shape_cast %228 : vector<1x2x128xf32> to vector<2x128xf32>
    %230 = arith.truncf %227 : vector<2x32xf32> to vector<2x32xbf16>
    %cst_70 = arith.constant dense<0.000000e+00> : vector<2x128xf32>
    %231 = tpu.matmul %230, %155, %cst_70 {dimension_numbers = #tpu.dot_dimension_numbers<[1], [0], [0], [1], [0, 0, 1, 1], [], []>} : vector<2x32xbf16>, vector<32x128xbf16>, vector<2x128xf32> -> vector<2x128xf32>
    %232 = arith.addf %229, %231 : vector<2x128xf32>
    %233 = vector.extract_strided_slice %232 {offsets = [0, 0], sizes = [2, 32], strides = [1, 1]} : vector<2x128xf32> to vector<2x32xf32>
    %234 = arith.negf %233 : vector<2x32xf32>
    %235 = math.exp %234 : vector<2x32xf32>
    %cst_71 = arith.constant 1.000000e+00 : f32
    %236 = vector.broadcast %cst_71 : f32 to vector<2x32xf32>
    %237 = arith.addf %236, %235 : vector<2x32xf32>
    %238 = arith.divf %236, %237 : vector<2x32xf32>
    %239 = vector.extract_strided_slice %232 {offsets = [0, 32], sizes = [2, 32], strides = [1, 1]} : vector<2x128xf32> to vector<2x32xf32>
    %240 = arith.negf %239 : vector<2x32xf32>
    %241 = math.exp %240 : vector<2x32xf32>
    %cst_72 = arith.constant 1.000000e+00 : f32
    %242 = vector.broadcast %cst_72 : f32 to vector<2x32xf32>
    %243 = arith.addf %242, %241 : vector<2x32xf32>
    %244 = arith.divf %242, %243 : vector<2x32xf32>
    %245 = vector.extract_strided_slice %232 {offsets = [0, 64], sizes = [2, 32], strides = [1, 1]} : vector<2x128xf32> to vector<2x32xf32>
    %246 = math.tanh %245 : vector<2x32xf32>
    %247 = vector.extract_strided_slice %232 {offsets = [0, 96], sizes = [2, 32], strides = [1, 1]} : vector<2x128xf32> to vector<2x32xf32>
    %248 = arith.negf %247 : vector<2x32xf32>
    %249 = math.exp %248 : vector<2x32xf32>
    %cst_73 = arith.constant 1.000000e+00 : f32
    %250 = vector.broadcast %cst_73 : f32 to vector<2x32xf32>
    %251 = arith.addf %250, %249 : vector<2x32xf32>
    %252 = arith.divf %250, %251 : vector<2x32xf32>
    %253 = arith.mulf %244, %225 : vector<2x32xf32>
    %254 = arith.mulf %238, %246 : vector<2x32xf32>
    %255 = arith.addf %253, %254 : vector<2x32xf32>
    %256 = math.tanh %255 : vector<2x32xf32>
    %257 = arith.mulf %252, %256 : vector<2x32xf32>
    %258 = vector.extract_strided_slice %163 {offsets = [3, 0, 0], sizes = [1, 2, 128], strides = [1, 1, 1]} : vector<4x2x128xf32> to vector<1x2x128xf32>
    %259 = vector.shape_cast %258 : vector<1x2x128xf32> to vector<2x128xf32>
    %260 = arith.truncf %257 : vector<2x32xf32> to vector<2x32xbf16>
    %cst_74 = arith.constant dense<0.000000e+00> : vector<2x128xf32>
    %261 = tpu.matmul %260, %155, %cst_74 {dimension_numbers = #tpu.dot_dimension_numbers<[1], [0], [0], [1], [0, 0, 1, 1], [], []>} : vector<2x32xbf16>, vector<32x128xbf16>, vector<2x128xf32> -> vector<2x128xf32>
    %262 = arith.addf %259, %261 : vector<2x128xf32>
    %263 = vector.extract_strided_slice %262 {offsets = [0, 0], sizes = [2, 32], strides = [1, 1]} : vector<2x128xf32> to vector<2x32xf32>
    %264 = arith.negf %263 : vector<2x32xf32>
    %265 = math.exp %264 : vector<2x32xf32>
    %cst_75 = arith.constant 1.000000e+00 : f32
    %266 = vector.broadcast %cst_75 : f32 to vector<2x32xf32>
    %267 = arith.addf %266, %265 : vector<2x32xf32>
    %268 = arith.divf %266, %267 : vector<2x32xf32>
    %269 = vector.extract_strided_slice %262 {offsets = [0, 32], sizes = [2, 32], strides = [1, 1]} : vector<2x128xf32> to vector<2x32xf32>
    %270 = arith.negf %269 : vector<2x32xf32>
    %271 = math.exp %270 : vector<2x32xf32>
    %cst_76 = arith.constant 1.000000e+00 : f32
    %272 = vector.broadcast %cst_76 : f32 to vector<2x32xf32>
    %273 = arith.addf %272, %271 : vector<2x32xf32>
    %274 = arith.divf %272, %273 : vector<2x32xf32>
    %275 = vector.extract_strided_slice %262 {offsets = [0, 64], sizes = [2, 32], strides = [1, 1]} : vector<2x128xf32> to vector<2x32xf32>
    %276 = math.tanh %275 : vector<2x32xf32>
    %277 = vector.extract_strided_slice %262 {offsets = [0, 96], sizes = [2, 32], strides = [1, 1]} : vector<2x128xf32> to vector<2x32xf32>
    %278 = arith.negf %277 : vector<2x32xf32>
    %279 = math.exp %278 : vector<2x32xf32>
    %cst_77 = arith.constant 1.000000e+00 : f32
    %280 = vector.broadcast %cst_77 : f32 to vector<2x32xf32>
    %281 = arith.addf %280, %279 : vector<2x32xf32>
    %282 = arith.divf %280, %281 : vector<2x32xf32>
    %283 = arith.mulf %274, %255 : vector<2x32xf32>
    %284 = arith.mulf %268, %276 : vector<2x32xf32>
    %285 = arith.addf %283, %284 : vector<2x32xf32>
    %286 = math.tanh %285 : vector<2x32xf32>
    %287 = arith.mulf %282, %286 : vector<2x32xf32>
    %c1_78 = arith.constant 1 : index
    %c0_79 = arith.constant 0 : index
    %c0_80 = arith.constant 0 : index
    %288 = vector.load %arg10[%c1_78, %c0_79, %c0_80] : memref<2x2x32xf32, #tpu.memory_space<vmem>>, vector<1x2x32xf32>
    %289 = vector.shape_cast %288 : vector<1x2x32xf32> to vector<2x32xf32>
    %290 = vector.shape_cast %287 : vector<2x32xf32> to vector<1x2x32xf32>
    tpu.vector_store %arg10[%c1_78, %c0_79, %c0_80], %290 {strides = array<i32>} : memref<2x2x32xf32, #tpu.memory_space<vmem>>, vector<1x2x32xf32>,
    %c1_81 = arith.constant 1 : index
    %c0_82 = arith.constant 0 : index
    %c0_83 = arith.constant 0 : index
    %291 = vector.load %arg11[%c1_81, %c0_82, %c0_83] : memref<2x2x32xf32, #tpu.memory_space<vmem>>, vector<1x2x32xf32>
    %292 = vector.shape_cast %291 : vector<1x2x32xf32> to vector<2x32xf32>
    %293 = vector.shape_cast %285 : vector<2x32xf32> to vector<1x2x32xf32>
    tpu.vector_store %arg11[%c1_81, %c0_82, %c0_83], %293 {strides = array<i32>} : memref<2x2x32xf32, #tpu.memory_space<vmem>>, vector<1x2x32xf32>,
    %c1_i32 = arith.constant 1 : i32
    %294 = arith.cmpi eq, %arg0, %c1_i32 : i32
    %295 = arith.extui %294 : i1 to i32
    %c0_i32_84 = arith.constant 0 : i32
    %296 = arith.cmpi ne, %295, %c0_i32_84 : i32
    scf.if %296 {
      %c0_85 = arith.constant 0 : index
      %c0_86 = arith.constant 0 : index
      %c0_87 = arith.constant 0 : index
      %297 = vector.load %arg10[%c0_85, %c0_86, %c0_87] : memref<2x2x32xf32, #tpu.memory_space<vmem>>, vector<2x2x32xf32>
      %c0_88 = arith.constant 0 : index
      %c0_89 = arith.constant 0 : index
      %c0_90 = arith.constant 0 : index
      %298 = vector.load %arg8[%c0_88, %c0_89, %c0_90] : memref<2x2x32xf32, #tpu.memory_space<vmem>>, vector<2x2x32xf32>
      tpu.vector_store %arg8[%c0_88, %c0_89, %c0_90], %297 {strides = array<i32>} : memref<2x2x32xf32, #tpu.memory_space<vmem>>, vector<2x2x32xf32>,
      %c0_91 = arith.constant 0 : index
      %c0_92 = arith.constant 0 : index
      %c0_93 = arith.constant 0 : index
      %299 = vector.load %arg11[%c0_91, %c0_92, %c0_93] : memref<2x2x32xf32, #tpu.memory_space<vmem>>, vector<2x2x32xf32>
      %c0_94 = arith.constant 0 : index
      %c0_95 = arith.constant 0 : index
      %c0_96 = arith.constant 0 : index
      %300 = vector.load %arg9[%c0_94, %c0_95, %c0_96] : memref<2x2x32xf32, #tpu.memory_space<vmem>>, vector<2x2x32xf32>
      tpu.vector_store %arg9[%c0_94, %c0_95, %c0_96], %299 {strides = array<i32>} : memref<2x2x32xf32, #tpu.memory_space<vmem>>, vector<2x2x32xf32>,
    } else {
    }
    return
  }
  func.func @transform_0(%arg0: i32) -> (i32, i32, i32) {
    %c0_i32 = arith.constant 0 : i32
    %c0_i32_0 = arith.constant 0 : i32
    %c0_i32_1 = arith.constant 0 : i32
    return %arg0, %c0_i32, %c0_i32_0 : i32, i32, i32
  }
  func.func @transform_1(%arg0: i32) -> (i32, i32) {
    %c0_i32 = arith.constant 0 : i32
    %c0_i32_0 = arith.constant 0 : i32
    %c0_i32_1 = arith.constant 0 : i32
    return %c0_i32, %c0_i32_0 : i32, i32
  }
  func.func @transform_2(%arg0: i32) -> (i32, i32) {
    %c0_i32 = arith.constant 0 : i32
    %c0_i32_0 = arith.constant 0 : i32
    %c0_i32_1 = arith.constant 0 : i32
    return %c0_i32, %c0_i32_0 : i32, i32
  }
  func.func @transform_3(%arg0: i32) -> (i32, i32) {
    %c0_i32 = arith.constant 0 : i32
    %c0_i32_0 = arith.constant 0 : i32
    %c0_i32_1 = arith.constant 0 : i32
    return %c0_i32, %c0_i32_0 : i32, i32
  }
  func.func @transform_4(%arg0: i32) -> (i32, i32) {
    %c0_i32 = arith.constant 0 : i32
    %c0_i32_0 = arith.constant 0 : i32
    %c0_i32_1 = arith.constant 0 : i32
    return %c0_i32, %c0_i32_0 : i32, i32
  }
  func.func @transform_5(%arg0: i32) -> (i32, i32) {
    %c0_i32 = arith.constant 0 : i32
    %c0_i32_0 = arith.constant 0 : i32
    %c0_i32_1 = arith.constant 0 : i32
    return %c0_i32, %c0_i32_0 : i32, i32
  }
  func.func @transform_6(%arg0: i32) -> (i32, i32) {
    %c0_i32 = arith.constant 0 : i32
    %c0_i32_0 = arith.constant 0 : i32
    %c0_i32_1 = arith.constant 0 : i32
    return %c0_i32, %c0_i32_0 : i32, i32
  }
  func.func @transform_7(%arg0: i32) -> (i32, i32, i32) {
    %c0_i32 = arith.constant 0 : i32
    %c0_i32_0 = arith.constant 0 : i32
    %c0_i32_1 = arith.constant 0 : i32
    %c0_i32_2 = arith.constant 0 : i32
    return %c0_i32, %c0_i32_0, %c0_i32_1 : i32, i32, i32
  }
  func.func @transform_8(%arg0: i32) -> (i32, i32, i32) {
    %c0_i32 = arith.constant 0 : i32
    %c0_i32_0 = arith.constant 0 : i32
    %c0_i32_1 = arith.constant 0 : i32
    %c0_i32_2 = arith.constant 0 : i32
    return %c0_i32, %c0_i32_0, %c0_i32_1 : i32, i32, i32
  }
}

</mosaic_0001>

<llo_original>
// kernel: tpu_custom_call.1
$region0: #{tpu_custom_call.1}
  #allocation0 [shape = 'u32[]', space=smem, size = 0x4, offset = 0x4, fixed_abs, tag = 'smem constant byte address 0x4 - core index']
  #allocation1 [shape = 'u32[72,128]{1,0:T(1,128)}', space=vmem, size = 0x9000, scoped, tag = 'internal scratch']
  #allocation2 [shape = 'f32[2,2,32]{2,1,0:T(2,128)}', space=vmem, size = 0x800, scoped, tag = 'scratch operand']
  #allocation3 [shape = 'f32[2,2,32]{2,1,0:T(2,128)}', space=vmem, size = 0x800, scoped, tag = 'scratch operand']
  #allocation4 [shape = 'f32[4,2,32]{2,1,0:T(2,128)}', space=vmem, size = 0x1000, scoped, tag = 'scratch operand']
  %s0 = inlined_call_operand.hbm [shape: bf16[8,2,16], index: 0, kind: input, shape index: {}]
  %s1 = inlined_call_operand.hbm [shape: bf16[16,128], index: 1, kind: input, shape index: {}]
  %s2 = inlined_call_operand.hbm [shape: bf16[32,128], index: 2, kind: input, shape index: {}]
  %s3 = inlined_call_operand.vmem [shape: f32[1,128], index: 3, kind: input, shape index: {}]
  %s4 = inlined_call_operand.hbm [shape: bf16[32,128], index: 4, kind: input, shape index: {}]
  %s5 = inlined_call_operand.hbm [shape: bf16[32,128], index: 5, kind: input, shape index: {}]
  %s6 = inlined_call_operand.vmem [shape: f32[1,128], index: 6, kind: input, shape index: {}]
  %s7 = inlined_call_operand.hbm [shape: f32[2,2,32], index: 7, kind: output, shape index: {0}]
  %s8 = inlined_call_operand.hbm [shape: f32[2,2,32], index: 8, kind: output, shape index: {1}]
  %9 = xla_tuple %s7, %s8
  %s10 = sld [smem:[#allocation0]]
  $region97: #{tpu_custom_call.1} parent=0
    _
  %s12 = ssub.s32 1, %s10
  %s13 = scalar_select 0, %s12, %s10
  $region1: #{tpu_custom_call.1} parent=0
    #allocation5 [shape = 'u8[4096]{0}', space=vmem, size = 0x1000, scoped, tag = 'input window, operand 0']
    #allocation6 [shape = 's32[2]{0}', space=sflag, size = 0x8, scoped, tag = 'scoped memory for tpu_custom_call.1']
    #allocation7 [shape = 's32[2]{0}', space=sflag, size = 0x8, scoped, tag = 'scoped memory for tpu_custom_call.1']
    #allocation8 [shape = 'u8[4096]{0}', space=vmem, size = 0x1000, scoped, tag = 'input window, operand 1, single buffered']
    #allocation9 [shape = 's32[1]{0}', space=sflag, size = 0x4, scoped, tag = 'scoped memory for tpu_custom_call.1']
    #allocation10 [shape = 'u8[8192]{0}', space=vmem, size = 0x2000, scoped, tag = 'input window, operand 2, single buffered']
    #allocation11 [shape = 'u8[8192]{0}', space=vmem, size = 0x2000, scoped, tag = 'input window, operand 4, single buffered']
    #allocation12 [shape = 's32[1]{0}', space=sflag, size = 0x4, scoped, tag = 'scoped memory for tpu_custom_call.1']
    #allocation13 [shape = 'u8[8192]{0}', space=vmem, size = 0x2000, scoped, tag = 'input window, operand 5, single buffered']
    #allocation14 [shape = 'u8[2048]{0}', space=vmem, size = 0x800, scoped, tag = 'output window, operand 0, single buffered']
    #allocation15 [shape = 'u8[2048]{0}', space=vmem, size = 0x800, scoped, tag = 'output window, operand 1, single buffered']
    #allocation16 [shape = 's32[1]{0}', space=sflag, size = 0x4, scoped, tag = 'scoped memory for tpu_custom_call.1']
    %14 = vsyncpa [#allocation6], 0
    %s15 = scalar_lea.sflag [#allocation6], 1
    %16 = vsyncpa %s15, 0
    %17 = vsyncpa [#allocation9], 0
    %18 = vsyncpa [#allocation12], 0
    %19 = vsyncpa [#allocation7], 0
    %20 = vsyncpa [#allocation16], 0
    loop: start=0, step=1, limit=4
    $region2: #{tpu_custom_call.1} parent=1 // loop_pre_header
      _
    $region3: #{tpu_custom_call.1} parent=1 // loop_header
      %s22 = sphi 0, %s26
      %p23 = scmp.ge.s32.totalorder %s22, 4
      %s32 = sphi 0, %s34
      %s35 = sphi 0, %s32
      %s36 = sphi 0, %s35
      %s52 = sphi 0, %s36
      %s56 = sphi 0, %s56
      %s58 = sphi 0, %s56
      %s59 = sphi 0, %s58
      %s73 = sphi 0, %s59
      %s77 = sphi 0, %s77
      %s79 = sphi 0, %s77
      %s80 = sphi 0, %s79
      %s94 = sphi 0, %s80
      %s98 = sphi 0, %s98
      %s100 = sphi 0, %s98
      %s101 = sphi 0, %s100
      %s115 = sphi 0, %s101
      %s119 = sphi 0, %s119
      %s121 = sphi 0, %s119
      %s122 = sphi 0, %s121
      %s136 = sphi 0, %s122
      %s140 = sphi 0, %s140
      %s142 = sphi 0, %s140
      %s143 = sphi 0, %s142
      %s157 = sphi 0, %s143
      %s161 = sphi 0, %s161
      %s163 = sphi 0, %s161
      %s164 = sphi 0, %s163
      %s178 = sphi 0, %s164
      %s182 = sphi 0, %s182
      %s184 = sphi 0, %s182
      %s185 = sphi 0, %s184
      %s199 = sphi 0, %s185
      %s203 = sphi 0, %s203
      %s205 = sphi 0, %s203
      %s206 = sphi 0, %s205
      %s220 = sphi 0, %s206
    $region4: #{tpu_custom_call.1} parent=1 // loop_header_branch
      %25 = sbr.rel (%p23) target = $region8
    $region5: #{tpu_custom_call.1} parent=1 // loop_body
      %s27 = ssub.s32 %s22, 1
      %s28 = ssub.s32 %s22, 2
      %s29 = sadd.s32 %s22, 1
      %s30 = ssub.s32 %s22, %s29
      %p31 = scmp.eq.s32.totalorder %s30, 0
      %s33 = sadd.s32 %s32, 1
      %s34 = scalar_select %p31, %s32, %s33
      %p37 = pneg %p31
      %p38 = scmp.eq.s32.totalorder %s22, 1
      %p39 = por %p37, %p38
      %p40 = scmp.ne.s32.totalorder %s32, %s35
      %p41 = scmp.eq.s32.totalorder %s22, 0
      %p42 = por %p40, %p41
      %p43 = scmp.ne.s32.totalorder %s32, %s35
      %p44 = scmp.eq.s32.totalorder %s27, 1
      %p45 = por %p43, %p44
      %p46 = scmp.ne.s32.totalorder %s35, %s36
      %p47 = scmp.eq.s32.totalorder %s27, 0
      %p48 = por %p46, %p47
      %p49 = scmp.ne.s32.totalorder %s35, %s36
      %p50 = scmp.eq.s32.totalorder %s28, 1
      %p51 = por %p49, %p50
      %p53 = scmp.ne.s32.totalorder %s36, %s52
      %p54 = scmp.eq.s32.totalorder %s28, 0
      %p55 = por %p53, %p54
      %s57 = sadd.s32 %s56, 1
      %p60 = scmp.eq.s32.totalorder %s22, 1
      %p61 = scmp.ne.s32.totalorder %s56, %s58
      %p62 = scmp.eq.s32.totalorder %s22, 0
      %p63 = por %p61, %p62
      %p64 = scmp.ne.s32.totalorder %s56, %s58
      %p65 = scmp.eq.s32.totalorder %s27, 1
      %p66 = por %p64, %p65
      %p67 = scmp.ne.s32.totalorder %s58, %s59
      %p68 = scmp.eq.s32.totalorder %s27, 0
      %p69 = por %p67, %p68
      %p70 = scmp.ne.s32.totalorder %s58, %s59
      %p71 = scmp.eq.s32.totalorder %s28, 1
      %p72 = por %p70, %p71
      %p74 = scmp.ne.s32.totalorder %s59, %s73
      %p75 = scmp.eq.s32.totalorder %s28, 0
      %p76 = por %p74, %p75
      %s78 = sadd.s32 %s77, 1
      %p81 = scmp.eq.s32.totalorder %s22, 1
      %p82 = scmp.ne.s32.totalorder %s77, %s79
      %p83 = scmp.eq.s32.totalorder %s22, 0
      %p84 = por %p82, %p83
      %p85 = scmp.ne.s32.totalorder %s77, %s79
      %p86 = scmp.eq.s32.totalorder %s27, 1
      %p87 = por %p85, %p86
      %p88 = scmp.ne.s32.totalorder %s79, %s80
      %p89 = scmp.eq.s32.totalorder %s27, 0
      %p90 = por %p88, %p89
      %p91 = scmp.ne.s32.totalorder %s79, %s80
      %p92 = scmp.eq.s32.totalorder %s28, 1
      %p93 = por %p91, %p92
      %p95 = scmp.ne.s32.totalorder %s80, %s94
      %p96 = scmp.eq.s32.totalorder %s28, 0
      %p97 = por %p95, %p96
      %s99 = sadd.s32 %s98, 1
      %p102 = scmp.eq.s32.totalorder %s22, 1
      %p103 = scmp.ne.s32.totalorder %s98, %s100
      %p104 = scmp.eq.s32.totalorder %s22, 0
      %p105 = por %p103, %p104
      %p106 = scmp.ne.s32.totalorder %s98, %s100
      %p107 = scmp.eq.s32.totalorder %s27, 1
      %p108 = por %p106, %p107
      %p109 = scmp.ne.s32.totalorder %s100, %s101
      %p110 = scmp.eq.s32.totalorder %s27, 0
      %p111 = por %p109, %p110
      %p112 = scmp.ne.s32.totalorder %s100, %s101
      %p113 = scmp.eq.s32.totalorder %s28, 1
      %p114 = por %p112, %p113
      %p116 = scmp.ne.s32.totalorder %s101, %s115
      %p117 = scmp.eq.s32.totalorder %s28, 0
      %p118 = por %p116, %p117
      %s120 = sadd.s32 %s119, 1
      %p123 = scmp.eq.s32.totalorder %s22, 1
      %p124 = scmp.ne.s32.totalorder %s119, %s121
      %p125 = scmp.eq.s32.totalorder %s22, 0
      %p126 = por %p124, %p125
      %p127 = scmp.ne.s32.totalorder %s119, %s121
      %p128 = scmp.eq.s32.totalorder %s27, 1
      %p129 = por %p127, %p128
      %p130 = scmp.ne.s32.totalorder %s121, %s122
      %p131 = scmp.eq.s32.totalorder %s27, 0
      %p132 = por %p130, %p131
      %p133 = scmp.ne.s32.totalorder %s121, %s122
      %p134 = scmp.eq.s32.totalorder %s28, 1
      %p135 = por %p133, %p134
      %p137 = scmp.ne.s32.totalorder %s122, %s136
      %p138 = scmp.eq.s32.totalorder %s28, 0
      %p139 = por %p137, %p138
      %s141 = sadd.s32 %s140, 1
      %p144 = scmp.eq.s32.totalorder %s22, 1
      %p145 = scmp.ne.s32.totalorder %s140, %s142
      %p146 = scmp.eq.s32.totalorder %s22, 0
      %p147 = por %p145, %p146
      %p148 = scmp.ne.s32.totalorder %s140, %s142
      %p149 = scmp.eq.s32.totalorder %s27, 1
      %p150 = por %p148, %p149
      %p151 = scmp.ne.s32.totalorder %s142, %s143
      %p152 = scmp.eq.s32.totalorder %s27, 0
      %p153 = por %p151, %p152
      %p154 = scmp.ne.s32.totalorder %s142, %s143
      %p155 = scmp.eq.s32.totalorder %s28, 1
      %p156 = por %p154, %p155
      %p158 = scmp.ne.s32.totalorder %s143, %s157
      %p159 = scmp.eq.s32.totalorder %s28, 0
      %p160 = por %p158, %p159
      %s162 = sadd.s32 %s161, 1
      %p165 = scmp.eq.s32.totalorder %s22, 1
      %p166 = scmp.ne.s32.totalorder %s161, %s163
      %p167 = scmp.eq.s32.totalorder %s22, 0
      %p168 = por %p166, %p167
      %p169 = scmp.ne.s32.totalorder %s161, %s163
      %p170 = scmp.eq.s32.totalorder %s27, 1
      %p171 = por %p169, %p170
      %p172 = scmp.ne.s32.totalorder %s163, %s164
      %p173 = scmp.eq.s32.totalorder %s27, 0
      %p174 = por %p172, %p173
      %p175 = scmp.ne.s32.totalorder %s163, %s164
      %p176 = scmp.eq.s32.totalorder %s28, 1
      %p177 = por %p175, %p176
      %p179 = scmp.ne.s32.totalorder %s164, %s178
      %p180 = scmp.eq.s32.totalorder %s28, 0
      %p181 = por %p179, %p180
      %s183 = sadd.s32 %s182, 1
      %p186 = scmp.eq.s32.totalorder %s22, 1
      %p187 = scmp.ne.s32.totalorder %s182, %s184
      %p188 = scmp.eq.s32.totalorder %s22, 0
      %p189 = por %p187, %p188
      %p190 = scmp.ne.s32.totalorder %s182, %s184
      %p191 = scmp.eq.s32.totalorder %s27, 1
      %p192 = por %p190, %p191
      %p193 = scmp.ne.s32.totalorder %s184, %s185
      %p194 = scmp.eq.s32.totalorder %s27, 0
      %p195 = por %p193, %p194
      %p196 = scmp.ne.s32.totalorder %s184, %s185
      %p197 = scmp.eq.s32.totalorder %s28, 1
      %p198 = por %p196, %p197
      %p200 = scmp.ne.s32.totalorder %s185, %s199
      %p201 = scmp.eq.s32.totalorder %s28, 0
      %p202 = por %p200, %p201
      %s204 = sadd.s32 %s203, 1
      %p207 = scmp.eq.s32.totalorder %s22, 1
      %p208 = scmp.ne.s32.totalorder %s203, %s205
      %p209 = scmp.eq.s32.totalorder %s22, 0
      %p210 = por %p208, %p209
      %p211 = scmp.ne.s32.totalorder %s203, %s205
      %p212 = scmp.eq.s32.totalorder %s27, 1
      %p213 = por %p211, %p212
      %p214 = scmp.ne.s32.totalorder %s205, %s206
      %p215 = scmp.eq.s32.totalorder %s27, 0
      %p216 = por %p214, %p215
      %p217 = scmp.ne.s32.totalorder %s205, %s206
      %p218 = scmp.eq.s32.totalorder %s28, 1
      %p219 = por %p217, %p218
      %p221 = scmp.ne.s32.totalorder %s206, %s220
      %p222 = scmp.eq.s32.totalorder %s28, 0
      %p223 = por %p221, %p222
      %p224 = scmp.le.s32.totalorder 1, %s22
      %p225 = scmp.lt.s32.totalorder %s22, 3
      %p226 = pnand %p224, %p225
      %p227 = pneg %p226
      // Predicated region
      $region9: #{tpu_custom_call.1} parent=5 // pred_check
        _
      $region10: #{tpu_custom_call.1} parent=5 // pred_check_branch
        %229 = sbr.rel (%p226) target = $region12
      $region11: #{tpu_custom_call.1} parent=5 // pred_region
        %s230 = ssub.s32 %s22, 1
        // Predicated region
        $region13: #{tpu_custom_call.1} parent=11 // pred_check
          %p231 = pneg %p69
        $region14: #{tpu_custom_call.1} parent=11 // pred_check_branch
          %233 = sbr.rel (%p231) target = $region16
        $region15: #{tpu_custom_call.1} parent=11 // pred_region
          %235 = vsyncadd [#allocation9], 0
          %s236 = sshll.u32 %s1, 4
          %s237 = int_to_ptr.hbm [resolvable:$true] %s236
          %s238 = sshll.u32 [#allocation8], 4
          %s239 = int_to_ptr.vmem [resolvable:$true] %s238
          %244 = dma.hbm_to_vmem [thread:$0]  %s237, 128, %s239, [#allocation9], 64, 64, 4
        $region16: #{tpu_custom_call.1} parent=11 // pred_fallthru
          _
        // Predicated region
        $region17: #{tpu_custom_call.1} parent=11 // pred_check
          %p245 = pneg %p90
        $region18: #{tpu_custom_call.1} parent=11 // pred_check_branch
          %247 = sbr.rel (%p245) target = $region20
        $region19: #{tpu_custom_call.1} parent=11 // pred_region
          %249 = vsyncadd [#allocation9], 0
          %s250 = sshll.u32 %s2, 4
          %s251 = int_to_ptr.hbm [resolvable:$true] %s250
          %s252 = sshll.u32 [#allocation10], 4
          %s253 = int_to_ptr.vmem [resolvable:$true] %s252
          %258 = dma.hbm_to_vmem [thread:$0]  %s251, 256, %s253, [#allocation9], 64, 64, 4
        $region20: #{tpu_custom_call.1} parent=11 // pred_fallthru
          _
        // Predicated region
        $region21: #{tpu_custom_call.1} parent=11 // pred_check
          %p259 = pneg %p111
        $region22: #{tpu_custom_call.1} parent=11 // pred_check_branch
          %261 = sbr.rel (%p259) target = $region24
        $region23: #{tpu_custom_call.1} parent=11 // pred_region
          _
        $region24: #{tpu_custom_call.1} parent=11 // pred_fallthru
          _
        // Predicated region
        $region25: #{tpu_custom_call.1} parent=11 // pred_check
          %p262 = pneg %p132
        $region26: #{tpu_custom_call.1} parent=11 // pred_check_branch
          %264 = sbr.rel (%p262) target = $region28
        $region27: #{tpu_custom_call.1} parent=11 // pred_region
          %266 = vsyncadd [#allocation12], 0
          %s267 = sshll.u32 %s4, 4
          %s268 = int_to_ptr.hbm [resolvable:$true] %s267
          %s269 = sshll.u32 [#allocation11], 4
          %s270 = int_to_ptr.vmem [resolvable:$true] %s269
          %275 = dma.hbm_to_vmem [thread:$0]  %s268, 256, %s270, [#allocation12], 64, 64, 4
        $region28: #{tpu_custom_call.1} parent=11 // pred_fallthru
          _
        // Predicated region
        $region29: #{tpu_custom_call.1} parent=11 // pred_check
          %p276 = pneg %p153
        $region30: #{tpu_custom_call.1} parent=11 // pred_check_branch
          %278 = sbr.rel (%p276) target = $region32
        $region31: #{tpu_custom_call.1} parent=11 // pred_region
          %280 = vsyncadd [#allocation12], 0
          %s281 = sshll.u32 %s5, 4
          %s282 = int_to_ptr.hbm [resolvable:$true] %s281
          %s283 = sshll.u32 [#allocation13], 4
          %s284 = int_to_ptr.vmem [resolvable:$true] %s283
          %289 = dma.hbm_to_vmem [thread:$0]  %s282, 256, %s284, [#allocation12], 64, 64, 4
        $region32: #{tpu_custom_call.1} parent=11 // pred_fallthru
          _
        // Predicated region
        $region33: #{tpu_custom_call.1} parent=11 // pred_check
          %p290 = pneg %p174
        $region34: #{tpu_custom_call.1} parent=11 // pred_check_branch
          %292 = sbr.rel (%p290) target = $region36
        $region35: #{tpu_custom_call.1} parent=11 // pred_region
          _
        $region36: #{tpu_custom_call.1} parent=11 // pred_fallthru
          _
      $region12: #{tpu_custom_call.1} parent=5 // pred_fallthru
        _
      %p293 = scmp.lt.s32.totalorder %s22, 2
      // Predicated region
      $region37: #{tpu_custom_call.1} parent=5 // pred_check
        %p294 = pneg %p293
      $region38: #{tpu_custom_call.1} parent=5 // pred_check_branch
        %296 = sbr.rel (%p294) target = $region40
      $region39: #{tpu_custom_call.1} parent=5 // pred_region
        // Predicated region
        $region41: #{tpu_custom_call.1} parent=39 // pred_check
          %p297 = pneg %p42
        $region42: #{tpu_custom_call.1} parent=39 // pred_check_branch
          %299 = sbr.rel (%p297) target = $region44
        $region43: #{tpu_custom_call.1} parent=39 // pred_region
          %s300 = sand.u32 %s32, 1
          %s301 = scalar_lea.sflag [#allocation6], %s300
          %s302 = sand.u32 %s32, 1
          %s303 = smul.addr %s302, 4
          %s304 = scalar_lea.vmem [#allocation5], %s303
          %s305 = smul.u32 4, %s22
          %307 = vsyncadd %s301, 0
          %s308 = scalar_lea.hbm %s0, %s305
          %s309 = sshll.u32 %s308, 4
          %s310 = int_to_ptr.hbm [resolvable:$true] %s309
          %s311 = sshll.u32 %s304, 4
          %s312 = int_to_ptr.vmem [resolvable:$true] %s311
          %317 = dma.hbm_to_vmem [thread:$0]  %s310, 64, %s312, %s301, 16, 16, 1
        $region44: #{tpu_custom_call.1} parent=39 // pred_fallthru
          _
      $region40: #{tpu_custom_call.1} parent=5 // pred_fallthru
        _
      %p318 = scmp.le.s32.totalorder 1, %s22
      %p319 = scmp.lt.s32.totalorder %s22, 3
      %p320 = pnand %p318, %p319
      %p321 = pneg %p320
      // Predicated region
      $region45: #{tpu_custom_call.1} parent=5 // pred_check
        _
      $region46: #{tpu_custom_call.1} parent=5 // pred_check_branch
        %323 = sbr.rel (%p320) target = $region48
      $region47: #{tpu_custom_call.1} parent=5 // pred_region
        %s324 = ssub.s32 %s22, 1
        %s325 = sand.u32 %s35, 1
        %s326 = scalar_lea.sflag [#allocation6], %s325
        %s327 = sand.u32 %s35, 1
        %s328 = smul.addr %s327, 4
        %s329 = scalar_lea.vmem [#allocation5], %s328
        // Predicated region
        $region49: #{tpu_custom_call.1} parent=47 // pred_check
          %p330 = pneg %p48
        $region50: #{tpu_custom_call.1} parent=47 // pred_check_branch
          %332 = sbr.rel (%p330) target = $region52
        $region51: #{tpu_custom_call.1} parent=47 // pred_region
          %334 = dma.done %s326, 64
        $region52: #{tpu_custom_call.1} parent=47 // pred_fallthru
          _
        // Predicated region
        $region53: #{tpu_custom_call.1} parent=47 // pred_check
          %p335 = pneg %p69
        $region54: #{tpu_custom_call.1} parent=47 // pred_check_branch
          %337 = sbr.rel (%p335) target = $region56
        $region55: #{tpu_custom_call.1} parent=47 // pred_region
          %339 = dma.done [#allocation9], 128
        $region56: #{tpu_custom_call.1} parent=47 // pred_fallthru
          _
        // Predicated region
        $region57: #{tpu_custom_call.1} parent=47 // pred_check
          %p340 = pneg %p90
        $region58: #{tpu_custom_call.1} parent=47 // pred_check_branch
          %342 = sbr.rel (%p340) target = $region60
        $region59: #{tpu_custom_call.1} parent=47 // pred_region
          %344 = dma.done [#allocation9], 256
        $region60: #{tpu_custom_call.1} parent=47 // pred_fallthru
          _
        // Predicated region
        $region61: #{tpu_custom_call.1} parent=47 // pred_check
          %p345 = pneg %p132
        $region62: #{tpu_custom_call.1} parent=47 // pred_check_branch
          %347 = sbr.rel (%p345) target = $region64
        $region63: #{tpu_custom_call.1} parent=47 // pred_region
          %349 = dma.done [#allocation12], 256
        $region64: #{tpu_custom_call.1} parent=47 // pred_fallthru
          _
        // Predicated region
        $region65: #{tpu_custom_call.1} parent=47 // pred_check
          %p350 = pneg %p153
        $region66: #{tpu_custom_call.1} parent=47 // pred_check_branch
          %352 = sbr.rel (%p350) target = $region68
        $region67: #{tpu_custom_call.1} parent=47 // pred_region
          %354 = dma.done [#allocation12], 256
        $region68: #{tpu_custom_call.1} parent=47 // pred_fallthru
          _
        %s355 = sand.u32 %s35, 1
        %s356 = scalar_lea.sflag [#allocation6], %s355
        %s357 = sand.u32 %s35, 1
        %s358 = smul.addr %s357, 4
        %s359 = scalar_lea.vmem [#allocation5], %s358
        %p360 = pneg %p48
        %p361 = pneg %p45
        %p362 = pneg %p69
        %p363 = pneg %p66
        %p364 = pneg %p90
        %p365 = pneg %p87
        %p366 = pneg %p111
        %p367 = pneg %p108
        %p368 = pneg %p132
        %p369 = pneg %p129
        %p370 = pneg %p153
        %p371 = pneg %p150
        %p372 = pneg %p174
        %p373 = pneg %p171
        %p374 = pneg %p195
        %p375 = pneg %p192
        %p376 = pneg %p216
        %p377 = pneg %p213
        %s378 = smul.u32 4, %s27
        %p380 = scmp.eq.s32.totalorder %s27, 0
        // Predicated region
        $region69: #{tpu_custom_call.1} parent=47 // pred_check
          %p381 = pneg %p380
        $region70: #{tpu_custom_call.1} parent=47 // pred_check_branch
          %383 = sbr.rel (%p381) target = $region72
        $region71: #{tpu_custom_call.1} parent=47 // pred_region
          %vm384 = vcmask 254976
          %385 = vst.msk [vmem:[#allocation2] sm:$0x3] %vm384, 0.0
          %386 = vst.msk [vmem:[#allocation2 + $0x2] sm:$0x3] %vm384, 0.0
          %387 = vst.msk [vmem:[#allocation3] sm:$0x3] %vm384, 0.0
          %388 = vst.msk [vmem:[#allocation3 + $0x2] sm:$0x3] %vm384, 0.0
        $region72: #{tpu_custom_call.1} parent=47 // pred_fallthru
          _
        %v389 = vld [vmem:[#allocation8] sm:$0xf]
        %v390 = vld [vmem:[#allocation8 + $0x4] sm:$0xf]
        %v391 = vld [vmem:[#allocation10] sm:$0xf]
        %v392 = vld [vmem:[#allocation10 + $0x4] sm:$0xf]
        %v393 = vld [vmem:[#allocation10 + $0x8] sm:$0xf]
        %v394 = vld [vmem:[#allocation10 + $0xc] sm:$0xf]
        %v395 = vld [vmem:[%s3] sm:$0x1]
        %v396 = vld [vmem:[%s329] sm:$0x1]
        %v397 = vld [vmem:[%s329 + $0x1] sm:$0x1]
        %v398 = vld [vmem:[%s329 + $0x2] sm:$0x1]
        %v399 = vld [vmem:[%s329 + $0x3] sm:$0x1]
        %v401 = vperm.slane %v395, 0
        %404 = vst [vmem:[#allocation1] ss:$9 sm:$0xff] %v396
        %s406 = scalar_lea.vmem [#allocation1], 1
        %407 = vst [vmem:[%s406] ss:$9 sm:$0xff] %v397
        %s409 = scalar_lea.vmem [#allocation1], 2
        %410 = vst [vmem:[%s409] ss:$9 sm:$0xff] %v398
        %s412 = scalar_lea.vmem [#allocation1], 3
        %413 = vst [vmem:[%s412] ss:$9 sm:$0xff] %v399
        %v414 = vld [vmem:[#allocation1] sm:$0xff]
        %v417 = vunpack.c.l.b16 %v389
        %v418 = vunpack.c.l.b16 %v390
        %v419 = vpack.c.b16 %v418, %v417
        %vm421 = vcmask 130048
        %v422 = vsel %vm421, %v414, 0
        %424 = vmatpush.bf16.msra.mxu0 0
        %425 = vmatpush.bf16.msra.mxu0 0
        %426 = vmatpush.bf16.msra.mxu0 0
        %427 = vmatpush.bf16.msra.mxu0 0
        %428 = vmatpush.bf16.msra.mxu0 0
        %429 = vmatpush.bf16.msra.mxu0 0
        %430 = vmatpush.bf16.msra.mxu0 0
        %431 = vmatpush.bf16.msra.mxu0 %v419
        %432 = vmatmul.bf16.gmra.mxu0 %v422
        %v433 = vpop.f32.mrf.mxu0
        %v434 = vadd.f32 %v401, %v433
        %v435 = vpop.f32.mrf.mxu0
        %436 = vdwg.mxu0
        %v438 = vrot.slane %v434, 2
        %v439 = vrot.slane %v434, 4
        %v440 = vrot.slane %v434, 6
        %v444 = vld [vmem:[#allocation2] sm:$0x3]
        %v445 = vld [vmem:[#allocation3] sm:$0x3]
        %v446 = vpack.c.bf16 %v444, %v444
        %v451 = vunpack.c.l.b16 %v391
        %v452 = vunpack.c.l.b16 %v392
        %v453 = vunpack.c.l.b16 %v393
        %v454 = vunpack.c.l.b16 %v394
        %v455 = vpack.c.b16 %v452, %v451
        %v456 = vpack.c.b16 %v454, %v453
        %vm459 = vcmask 261120
        %v461 = vsel %vm459, %v446, 0
        %463 = vmatpush.bf16.msra.mxu0 0
        %464 = vmatpush.bf16.msra.mxu0 0
        %465 = vmatpush.bf16.msra.mxu0 0
        %466 = vmatpush.bf16.msra.mxu0 0
        %467 = vmatpush.bf16.msra.mxu0 0
        %468 = vmatpush.bf16.msra.mxu0 0
        %469 = vmatpush.bf16.msra.mxu0 %v456
        %470 = vmatpush.bf16.msra.mxu0 %v455
        %471 = vmatmul.bf16.gmra.mxu0 %v461
        %v472 = vpop.f32.mrf.mxu0
        %v473 = vadd.f32 0.0, %v472
        %v474 = vpop.f32.mrf.mxu0
        %475 = vdwg.mxu0
        %v476 = vadd.f32 %v434, %v473
        %v477 = vxor.u32 %v476, 2147483648
        %v478 = vmul.f32 %v477, 1.442695
        %v479 = vpow.pop %v478
        %v480 = vadd.f32 %v479, 1.0
        %v481 = vrcp.pop %v480
        %v482 = vmul.f32 %v480, %v481
        %v483 = vsub.f32 1.0, %v482
        %v484 = vmul.f32 %v481, %v483
        %v485 = vadd.f32 %v481, %v484
        %vm486 = vweird.f32 %v480
        %vm487 = vweird.f32 %v481
        %vm488 = vmor %vm486, %vm487
        %v489 = vsel %vm488, %v481, %v485
        %v490 = vand.u32 2147483647, %v480
        %vm491 = vcmp.eq.f32.partialorder %v490, 8.507059e+37
        %v492 = vand.u32 %v480, 2147483648
        %v493 = vor.u32 1.1754944e-38, %v492
        %v494 = vsel %vm491, %v493, %v489
        %v495 = vmul.f32 1.0, %v494
        %v496 = vtanh.pop %v476
        %498 = vrot.lane.b32.xlu0 %v445, 32
        %v499 = vpop.permute.xlu0 %498
        %v501 = vmul.f32 %v495, %v499
        %503 = vrot.lane.b32.xlu0 %v496, 64
        %v504 = vpop.permute.xlu0 %503
        %v506 = vmul.f32 %v495, %v504
        %508 = vrot.lane.b32.xlu0 %v506, 32
        %v509 = vpop.permute.xlu0 %508
        %v511 = vadd.f32 %v501, %v509
        %v512 = vtanh.pop %v511
        %514 = vrot.lane.b32.xlu0 %v512, 64
        %v515 = vpop.permute.xlu0 %514
        %v517 = vmul.f32 %v495, %v515
        %519 = vst [vmem:[#allocation1] ss:$4 sm:$0xff] %v517
        %v520 = vld.sshfl [vmem:[#allocation1] sm:$0xff pattern:$0x73625140]
        %521 = vrot.lane.b32.xlu0 %v520, 32
        %v522 = vpop.permute.xlu0 %521
        %vm524 = vcmask 254976
        %525 = vst.msk [vmem:[#allocation4] sm:$0x3] %vm524, %v522
        %v526 = vpack.c.bf16 %v517, %v517
        %528 = vrot.lane.b32.xlu0 %v526, 32
        %v529 = vpop.permute.xlu0 %528
        %v531 = vsel %vm459, %v529, 0
        %533 = vmatpush.bf16.msra.mxu0 0
        %534 = vmatpush.bf16.msra.mxu0 0
        %535 = vmatpush.bf16.msra.mxu0 0
        %536 = vmatpush.bf16.msra.mxu0 0
        %537 = vmatpush.bf16.msra.mxu0 0
        %538 = vmatpush.bf16.msra.mxu0 0
        %539 = vmatpush.bf16.msra.mxu0 %v456
        %540 = vmatpush.bf16.msra.mxu0 %v455
        %541 = vmatmul.bf16.gmra.mxu0 %v531
        %v542 = vpop.f32.mrf.mxu0
        %v543 = vadd.f32 0.0, %v542
        %v544 = vpop.f32.mrf.mxu0
        %545 = vdwg.mxu0
        %v546 = vadd.f32 %v438, %v543
        %v547 = vxor.u32 %v546, 2147483648
        %v548 = vmul.f32 %v547, 1.442695
        %v549 = vpow.pop %v548
        %v550 = vadd.f32 %v549, 1.0
        %v551 = vrcp.pop %v550
        %v552 = vmul.f32 %v550, %v551
        %v553 = vsub.f32 1.0, %v552
        %v554 = vmul.f32 %v551, %v553
        %v555 = vadd.f32 %v551, %v554
        %vm556 = vweird.f32 %v550
        %vm557 = vweird.f32 %v551
        %vm558 = vmor %vm556, %vm557
        %v559 = vsel %vm558, %v551, %v555
        %v560 = vand.u32 2147483647, %v550
        %vm561 = vcmp.eq.f32.partialorder %v560, 8.507059e+37
        %v562 = vand.u32 %v550, 2147483648
        %v563 = vor.u32 1.1754944e-38, %v562
        %v564 = vsel %vm561, %v563, %v559
        %v565 = vmul.f32 1.0, %v564
        %v566 = vtanh.pop %v546
        %v567 = vmul.f32 %v565, %v511
        %569 = vrot.lane.b32.xlu0 %v566, 64
        %v570 = vpop.permute.xlu0 %569
        %v572 = vmul.f32 %v565, %v570
        %574 = vrot.lane.b32.xlu0 %v572, 32
        %v575 = vpop.permute.xlu0 %574
        %v577 = vadd.f32 %v567, %v575
        %v578 = vtanh.pop %v577
        %580 = vrot.lane.b32.xlu0 %v578, 64
        %v581 = vpop.permute.xlu0 %580
        %v583 = vmul.f32 %v565, %v581
        %585 = vst [vmem:[#allocation1] ss:$4 sm:$0xff] %v583
        %v586 = vld.sshfl [vmem:[#allocation1] sm:$0xff pattern:$0x73625140]
        %587 = vrot.lane.b32.xlu0 %v586, 32
        %v588 = vpop.permute.xlu0 %587
        %s590 = scalar_lea.vmem [#allocation4], 2
        %591 = vst.msk [vmem:[%s590] sm:$0x3] %vm524, %v588
        %v592 = vpack.c.bf16 %v583, %v583
        %594 = vrot.lane.b32.xlu0 %v592, 32
        %v595 = vpop.permute.xlu0 %594
        %v597 = vsel %vm459, %v595, 0
        %599 = vmatpush.bf16.msra.mxu0 0
        %600 = vmatpush.bf16.msra.mxu0 0
        %601 = vmatpush.bf16.msra.mxu0 0
        %602 = vmatpush.bf16.msra.mxu0 0
        %603 = vmatpush.bf16.msra.mxu0 0
        %604 = vmatpush.bf16.msra.mxu0 0
        %605 = vmatpush.bf16.msra.mxu0 %v456
        %606 = vmatpush.bf16.msra.mxu0 %v455
        %607 = vmatmul.bf16.gmra.mxu0 %v597
        %v608 = vpop.f32.mrf.mxu0
        %v609 = vadd.f32 0.0, %v608
        %v610 = vpop.f32.mrf.mxu0
        %611 = vdwg.mxu0
        %v612 = vadd.f32 %v439, %v609
        %v613 = vxor.u32 %v612, 2147483648
        %v614 = vmul.f32 %v613, 1.442695
        %v615 = vpow.pop %v614
        %v616 = vadd.f32 %v615, 1.0
        %v617 = vrcp.pop %v616
        %v618 = vmul.f32 %v616, %v617
        %v619 = vsub.f32 1.0, %v618
        %v620 = vmul.f32 %v617, %v619
        %v621 = vadd.f32 %v617, %v620
        %vm622 = vweird.f32 %v616
        %vm623 = vweird.f32 %v617
        %vm624 = vmor %vm622, %vm623
        %v625 = vsel %vm624, %v617, %v621
        %v626 = vand.u32 2147483647, %v616
        %vm627 = vcmp.eq.f32.partialorder %v626, 8.507059e+37
        %v628 = vand.u32 %v616, 2147483648
        %v629 = vor.u32 1.1754944e-38, %v628
        %v630 = vsel %vm627, %v629, %v625
        %v631 = vmul.f32 1.0, %v630
        %v632 = vtanh.pop %v612
        %v633 = vmul.f32 %v631, %v577
        %635 = vrot.lane.b32.xlu0 %v632, 64
        %v636 = vpop.permute.xlu0 %635
        %v638 = vmul.f32 %v631, %v636
        %640 = vrot.lane.b32.xlu0 %v638, 32
        %v641 = vpop.permute.xlu0 %640
        %v643 = vadd.f32 %v633, %v641
        %v644 = vtanh.pop %v643
        %646 = vrot.lane.b32.xlu0 %v644, 64
        %v647 = vpop.permute.xlu0 %646
        %v649 = vmul.f32 %v631, %v647
        %651 = vst [vmem:[#allocation1] ss:$4 sm:$0xff] %v649
        %v652 = vld.sshfl [vmem:[#allocation1] sm:$0xff pattern:$0x73625140]
        %653 = vrot.lane.b32.xlu0 %v652, 32
        %v654 = vpop.permute.xlu0 %653
        %s656 = scalar_lea.vmem [#allocation4], 4
        %657 = vst.msk [vmem:[%s656] sm:$0x3] %vm524, %v654
        %v658 = vpack.c.bf16 %v649, %v649
        %660 = vrot.lane.b32.xlu0 %v658, 32
        %v661 = vpop.permute.xlu0 %660
        %v663 = vsel %vm459, %v661, 0
        %665 = vmatpush.bf16.msra.mxu0 0
        %666 = vmatpush.bf16.msra.mxu0 0
        %667 = vmatpush.bf16.msra.mxu0 0
        %668 = vmatpush.bf16.msra.mxu0 0
        %669 = vmatpush.bf16.msra.mxu0 0
        %670 = vmatpush.bf16.msra.mxu0 0
        %671 = vmatpush.bf16.msra.mxu0 %v456
        %672 = vmatpush.bf16.msra.mxu0 %v455
        %673 = vmatmul.bf16.gmra.mxu0 %v663
        %v674 = vpop.f32.mrf.mxu0
        %v675 = vadd.f32 0.0, %v674
        %v676 = vpop.f32.mrf.mxu0
        %677 = vdwg.mxu0
        %v678 = vadd.f32 %v440, %v675
        %v679 = vxor.u32 %v678, 2147483648
        %v680 = vmul.f32 %v679, 1.442695
        %v681 = vpow.pop %v680
        %v682 = vadd.f32 %v681, 1.0
        %v683 = vrcp.pop %v682
        %v684 = vmul.f32 %v682, %v683
        %v685 = vsub.f32 1.0, %v684
        %v686 = vmul.f32 %v683, %v685
        %v687 = vadd.f32 %v683, %v686
        %vm688 = vweird.f32 %v682
        %vm689 = vweird.f32 %v683
        %vm690 = vmor %vm688, %vm689
        %v691 = vsel %vm690, %v683, %v687
        %v692 = vand.u32 2147483647, %v682
        %vm693 = vcmp.eq.f32.partialorder %v692, 8.507059e+37
        %v694 = vand.u32 %v682, 2147483648
        %v695 = vor.u32 1.1754944e-38, %v694
        %v696 = vsel %vm693, %v695, %v691
        %v697 = vmul.f32 1.0, %v696
        %v698 = vtanh.pop %v678
        %v699 = vmul.f32 %v697, %v643
        %701 = vrot.lane.b32.xlu0 %v698, 64
        %v702 = vpop.permute.xlu0 %701
        %v704 = vmul.f32 %v697, %v702
        %706 = vrot.lane.b32.xlu0 %v704, 32
        %v707 = vpop.permute.xlu0 %706
        %v709 = vadd.f32 %v699, %v707
        %v710 = vtanh.pop %v709
        %712 = vrot.lane.b32.xlu0 %v710, 64
        %v713 = vpop.permute.xlu0 %712
        %v715 = vmul.f32 %v697, %v713
        %717 = vst [vmem:[#allocation1] ss:$4 sm:$0xff] %v715
        %v718 = vld.sshfl [vmem:[#allocation1] sm:$0xff pattern:$0x73625140]
        %719 = vrot.lane.b32.xlu0 %v718, 32
        %v720 = vpop.permute.xlu0 %719
        %s722 = scalar_lea.vmem [#allocation4], 6
        %723 = vst.msk [vmem:[%s722] sm:$0x3] %vm524, %v720
        %724 = vst [vmem:[#allocation1] ss:$4 sm:$0xff] %v715
        %v725 = vld.sshfl [vmem:[#allocation1] sm:$0xff pattern:$0x73625140]
        %726 = vrot.lane.b32.xlu0 %v725, 32
        %v727 = vpop.permute.xlu0 %726
        %729 = vst.msk [vmem:[#allocation2] sm:$0x3] %vm524, %v727
        %731 = vst [vmem:[#allocation1] ss:$4 sm:$0xff] %v709
        %v732 = vld.sshfl [vmem:[#allocation1] sm:$0xff pattern:$0x73625140]
        %733 = vrot.lane.b32.xlu0 %v732, 96
        %v734 = vpop.permute.xlu0 %733
        %736 = vst.msk [vmem:[#allocation3] sm:$0x3] %vm524, %v734
        %v737 = vld [vmem:[#allocation11] sm:$0xf]
        %v738 = vld [vmem:[#allocation11 + $0x4] sm:$0xf]
        %v739 = vld [vmem:[#allocation11 + $0x8] sm:$0xf]
        %v740 = vld [vmem:[#allocation11 + $0xc] sm:$0xf]
        %v741 = vld [vmem:[#allocation13] sm:$0xf]
        %v742 = vld [vmem:[#allocation13 + $0x4] sm:$0xf]
        %v743 = vld [vmem:[#allocation13 + $0x8] sm:$0xf]
        %v744 = vld [vmem:[#allocation13 + $0xc] sm:$0xf]
        %v745 = vld [vmem:[%s6] sm:$0x1]
        %v746 = vld [vmem:[#allocation4] sm:$0x3]
        %v747 = vld [vmem:[#allocation4 + $0x2] sm:$0x3]
        %v748 = vld [vmem:[#allocation4 + $0x4] sm:$0x3]
        %v749 = vld [vmem:[#allocation4 + $0x6] sm:$0x3]
        %v750 = vpack.c.bf16 %v746, %v746
        %v751 = vpack.c.bf16 %v747, %v747
        %v752 = vpack.c.bf16 %v748, %v748
        %v753 = vpack.c.bf16 %v749, %v749
        %v755 = vperm.slane %v745, 0
        %758 = vst [vmem:[#allocation1] ss:$9 sm:$0xff] %v750
        %s760 = scalar_lea.vmem [#allocation1], 1
        %761 = vst [vmem:[%s760] ss:$9 sm:$0xff] %v751
        %s763 = scalar_lea.vmem [#allocation1], 2
        %764 = vst [vmem:[%s763] ss:$9 sm:$0xff] %v752
        %s766 = scalar_lea.vmem [#allocation1], 3
        %767 = vst [vmem:[%s766] ss:$9 sm:$0xff] %v753
        %v768 = vld [vmem:[#allocation1] sm:$0xff]
        %v773 = vunpack.c.l.b16 %v737
        %v774 = vunpack.c.l.b16 %v738
        %v775 = vunpack.c.l.b16 %v739
        %v776 = vunpack.c.l.b16 %v740
        %v777 = vpack.c.b16 %v774, %v773
        %v778 = vpack.c.b16 %v776, %v775
        %v781 = vsel %vm459, %v768, 0
        %783 = vmatpush.bf16.msra.mxu0 0
        %784 = vmatpush.bf16.msra.mxu0 0
        %785 = vmatpush.bf16.msra.mxu0 0
        %786 = vmatpush.bf16.msra.mxu0 0
        %787 = vmatpush.bf16.msra.mxu0 0
        %788 = vmatpush.bf16.msra.mxu0 0
        %789 = vmatpush.bf16.msra.mxu0 %v778
        %790 = vmatpush.bf16.msra.mxu0 %v777
        %791 = vmatmul.bf16.gmra.mxu0 %v781
        %v792 = vpop.f32.mrf.mxu0
        %v793 = vadd.f32 %v755, %v792
        %v794 = vpop.f32.mrf.mxu0
        %795 = vdwg.mxu0
        %v797 = vrot.slane %v793, 2
        %v798 = vrot.slane %v793, 4
        %v799 = vrot.slane %v793, 6
        %s803 = scalar_lea.vmem [#allocation2], 2
        %v804 = vld [vmem:[%s803] sm:$0x3]
        %s805 = scalar_lea.vmem [#allocation3], 2
        %v806 = vld [vmem:[%s805] sm:$0x3]
        %v807 = vpack.c.bf16 %v804, %v804
        %v812 = vunpack.c.l.b16 %v741
        %v813 = vunpack.c.l.b16 %v742
        %v814 = vunpack.c.l.b16 %v743
        %v815 = vunpack.c.l.b16 %v744
        %v816 = vpack.c.b16 %v813, %v812
        %v817 = vpack.c.b16 %v815, %v814
        %v821 = vsel %vm459, %v807, 0
        %823 = vmatpush.bf16.msra.mxu0 0
        %824 = vmatpush.bf16.msra.mxu0 0
        %825 = vmatpush.bf16.msra.mxu0 0
        %826 = vmatpush.bf16.msra.mxu0 0
        %827 = vmatpush.bf16.msra.mxu0 0
        %828 = vmatpush.bf16.msra.mxu0 0
        %829 = vmatpush.bf16.msra.mxu0 %v817
        %830 = vmatpush.bf16.msra.mxu0 %v816
        %831 = vmatmul.bf16.gmra.mxu0 %v821
        %v832 = vpop.f32.mrf.mxu0
        %v833 = vadd.f32 0.0, %v832
        %v834 = vpop.f32.mrf.mxu0
        %835 = vdwg.mxu0
        %v836 = vadd.f32 %v793, %v833
        %v837 = vxor.u32 %v836, 2147483648
        %v838 = vmul.f32 %v837, 1.442695
        %v839 = vpow.pop %v838
        %v840 = vadd.f32 %v839, 1.0
        %v841 = vrcp.pop %v840
        %v842 = vmul.f32 %v840, %v841
        %v843 = vsub.f32 1.0, %v842
        %v844 = vmul.f32 %v841, %v843
        %v845 = vadd.f32 %v841, %v844
        %vm846 = vweird.f32 %v840
        %vm847 = vweird.f32 %v841
        %vm848 = vmor %vm846, %vm847
        %v849 = vsel %vm848, %v841, %v845
        %v850 = vand.u32 2147483647, %v840
        %vm851 = vcmp.eq.f32.partialorder %v850, 8.507059e+37
        %v852 = vand.u32 %v840, 2147483648
        %v853 = vor.u32 1.1754944e-38, %v852
        %v854 = vsel %vm851, %v853, %v849
        %v855 = vmul.f32 1.0, %v854
        %v856 = vtanh.pop %v836
        %858 = vrot.lane.b32.xlu0 %v806, 32
        %v859 = vpop.permute.xlu0 %858
        %v861 = vmul.f32 %v855, %v859
        %863 = vrot.lane.b32.xlu0 %v856, 64
        %v864 = vpop.permute.xlu0 %863
        %v866 = vmul.f32 %v855, %v864
        %868 = vrot.lane.b32.xlu0 %v866, 32
        %v869 = vpop.permute.xlu0 %868
        %v871 = vadd.f32 %v861, %v869
        %v872 = vtanh.pop %v871
        %874 = vrot.lane.b32.xlu0 %v872, 64
        %v875 = vpop.permute.xlu0 %874
        %v877 = vmul.f32 %v855, %v875
        %v878 = vpack.c.bf16 %v877, %v877
        %880 = vrot.lane.b32.xlu0 %v878, 32
        %v881 = vpop.permute.xlu0 %880
        %v883 = vsel %vm459, %v881, 0
        %885 = vmatpush.bf16.msra.mxu0 0
        %886 = vmatpush.bf16.msra.mxu0 0
        %887 = vmatpush.bf16.msra.mxu0 0
        %888 = vmatpush.bf16.msra.mxu0 0
        %889 = vmatpush.bf16.msra.mxu0 0
        %890 = vmatpush.bf16.msra.mxu0 0
        %891 = vmatpush.bf16.msra.mxu0 %v817
        %892 = vmatpush.bf16.msra.mxu0 %v816
        %893 = vmatmul.bf16.gmra.mxu0 %v883
        %v894 = vpop.f32.mrf.mxu0
        %v895 = vadd.f32 0.0, %v894
        %v896 = vpop.f32.mrf.mxu0
        %897 = vdwg.mxu0
        %v898 = vadd.f32 %v797, %v895
        %v899 = vxor.u32 %v898, 2147483648
        %v900 = vmul.f32 %v899, 1.442695
        %v901 = vpow.pop %v900
        %v902 = vadd.f32 %v901, 1.0
        %v903 = vrcp.pop %v902
        %v904 = vmul.f32 %v902, %v903
        %v905 = vsub.f32 1.0, %v904
        %v906 = vmul.f32 %v903, %v905
        %v907 = vadd.f32 %v903, %v906
        %vm908 = vweird.f32 %v902
        %vm909 = vweird.f32 %v903
        %vm910 = vmor %vm908, %vm909
        %v911 = vsel %vm910, %v903, %v907
        %v912 = vand.u32 2147483647, %v902
        %vm913 = vcmp.eq.f32.partialorder %v912, 8.507059e+37
        %v914 = vand.u32 %v902, 2147483648
        %v915 = vor.u32 1.1754944e-38, %v914
        %v916 = vsel %vm913, %v915, %v911
        %v917 = vmul.f32 1.0, %v916
        %v918 = vtanh.pop %v898
        %v919 = vmul.f32 %v917, %v871
        %921 = vrot.lane.b32.xlu0 %v918, 64
        %v922 = vpop.permute.xlu0 %921
        %v924 = vmul.f32 %v917, %v922
        %926 = vrot.lane.b32.xlu0 %v924, 32
        %v927 = vpop.permute.xlu0 %926
        %v929 = vadd.f32 %v919, %v927
        %v930 = vtanh.pop %v929
        %932 = vrot.lane.b32.xlu0 %v930, 64
        %v933 = vpop.permute.xlu0 %932
        %v935 = vmul.f32 %v917, %v933
        %v936 = vpack.c.bf16 %v935, %v935
        %938 = vrot.lane.b32.xlu0 %v936, 32
        %v939 = vpop.permute.xlu0 %938
        %v941 = vsel %vm459, %v939, 0
        %943 = vmatpush.bf16.msra.mxu0 0
        %944 = vmatpush.bf16.msra.mxu0 0
        %945 = vmatpush.bf16.msra.mxu0 0
        %946 = vmatpush.bf16.msra.mxu0 0
        %947 = vmatpush.bf16.msra.mxu0 0
        %948 = vmatpush.bf16.msra.mxu0 0
        %949 = vmatpush.bf16.msra.mxu0 %v817
        %950 = vmatpush.bf16.msra.mxu0 %v816
        %951 = vmatmul.bf16.gmra.mxu0 %v941
        %v952 = vpop.f32.mrf.mxu0
        %v953 = vadd.f32 0.0, %v952
        %v954 = vpop.f32.mrf.mxu0
        %955 = vdwg.mxu0
        %v956 = vadd.f32 %v798, %v953
        %v957 = vxor.u32 %v956, 2147483648
        %v958 = vmul.f32 %v957, 1.442695
        %v959 = vpow.pop %v958
        %v960 = vadd.f32 %v959, 1.0
        %v961 = vrcp.pop %v960
        %v962 = vmul.f32 %v960, %v961
        %v963 = vsub.f32 1.0, %v962
        %v964 = vmul.f32 %v961, %v963
        %v965 = vadd.f32 %v961, %v964
        %vm966 = vweird.f32 %v960
        %vm967 = vweird.f32 %v961
        %vm968 = vmor %vm966, %vm967
        %v969 = vsel %vm968, %v961, %v965
        %v970 = vand.u32 2147483647, %v960
        %vm971 = vcmp.eq.f32.partialorder %v970, 8.507059e+37
        %v972 = vand.u32 %v960, 2147483648
        %v973 = vor.u32 1.1754944e-38, %v972
        %v974 = vsel %vm971, %v973, %v969
        %v975 = vmul.f32 1.0, %v974
        %v976 = vtanh.pop %v956
        %v977 = vmul.f32 %v975, %v929
        %979 = vrot.lane.b32.xlu0 %v976, 64
        %v980 = vpop.permute.xlu0 %979
        %v982 = vmul.f32 %v975, %v980
        %984 = vrot.lane.b32.xlu0 %v982, 32
        %v985 = vpop.permute.xlu0 %984
        %v987 = vadd.f32 %v977, %v985
        %v988 = vtanh.pop %v987
        %990 = vrot.lane.b32.xlu0 %v988, 64
        %v991 = vpop.permute.xlu0 %990
        %v993 = vmul.f32 %v975, %v991
        %v994 = vpack.c.bf16 %v993, %v993
        %996 = vrot.lane.b32.xlu0 %v994, 32
        %v997 = vpop.permute.xlu0 %996
        %v999 = vsel %vm459, %v997, 0
        %1001 = vmatpush.bf16.msra.mxu0 0
        %1002 = vmatpush.bf16.msra.mxu0 0
        %1003 = vmatpush.bf16.msra.mxu0 0
        %1004 = vmatpush.bf16.msra.mxu0 0
        %1005 = vmatpush.bf16.msra.mxu0 0
        %1006 = vmatpush.bf16.msra.mxu0 0
        %1007 = vmatpush.bf16.msra.mxu0 %v817
        %1008 = vmatpush.bf16.msra.mxu0 %v816
        %1009 = vmatmul.bf16.gmra.mxu0 %v999
        %v1010 = vpop.f32.mrf.mxu0
        %v1011 = vadd.f32 0.0, %v1010
        %v1012 = vpop.f32.mrf.mxu0
        %1013 = vdwg.mxu0
        %v1014 = vadd.f32 %v799, %v1011
        %v1015 = vxor.u32 %v1014, 2147483648
        %v1016 = vmul.f32 %v1015, 1.442695
        %v1017 = vpow.pop %v1016
        %v1018 = vadd.f32 %v1017, 1.0
        %v1019 = vrcp.pop %v1018
        %v1020 = vmul.f32 %v1018, %v1019
        %v1021 = vsub.f32 1.0, %v1020
        %v1022 = vmul.f32 %v1019, %v1021
        %v1023 = vadd.f32 %v1019, %v1022
        %vm1024 = vweird.f32 %v1018
        %vm1025 = vweird.f32 %v1019
        %vm1026 = vmor %vm1024, %vm1025
        %v1027 = vsel %vm1026, %v1019, %v1023
        %v1028 = vand.u32 2147483647, %v1018
        %vm1029 = vcmp.eq.f32.partialorder %v1028, 8.507059e+37
        %v1030 = vand.u32 %v1018, 2147483648
        %v1031 = vor.u32 1.1754944e-38, %v1030
        %v1032 = vsel %vm1029, %v1031, %v1027
        %v1033 = vmul.f32 1.0, %v1032
        %v1034 = vtanh.pop %v1014
        %v1035 = vmul.f32 %v1033, %v987
        %1037 = vrot.lane.b32.xlu0 %v1034, 64
        %v1038 = vpop.permute.xlu0 %1037
        %v1040 = vmul.f32 %v1033, %v1038
        %1042 = vrot.lane.b32.xlu0 %v1040, 32
        %v1043 = vpop.permute.xlu0 %1042
        %v1045 = vadd.f32 %v1035, %v1043
        %v1046 = vtanh.pop %v1045
        %1048 = vrot.lane.b32.xlu0 %v1046, 64
        %v1049 = vpop.permute.xlu0 %1048
        %v1051 = vmul.f32 %v1033, %v1049
        %1053 = vst [vmem:[#allocation1] ss:$4 sm:$0xff] %v1051
        %v1054 = vld.sshfl [vmem:[#allocation1] sm:$0xff pattern:$0x73625140]
        %1055 = vrot.lane.b32.xlu0 %v1054, 32
        %v1056 = vpop.permute.xlu0 %1055
        %1058 = vst.msk [vmem:[%s803] sm:$0x3] %vm524, %v1056
        %1060 = vst [vmem:[#allocation1] ss:$4 sm:$0xff] %v1045
        %v1061 = vld.sshfl [vmem:[#allocation1] sm:$0xff pattern:$0x73625140]
        %1062 = vrot.lane.b32.xlu0 %v1061, 96
        %v1063 = vpop.permute.xlu0 %1062
        %1065 = vst.msk [vmem:[%s805] sm:$0x3] %vm524, %v1063
        %p1066 = scmp.eq.s32.totalorder %s27, 1
        // Predicated region
        $region73: #{tpu_custom_call.1} parent=47 // pred_check
          %p1067 = pneg %p1066
        $region74: #{tpu_custom_call.1} parent=47 // pred_check_branch
          %1069 = sbr.rel (%p1067) target = $region76
        $region75: #{tpu_custom_call.1} parent=47 // pred_region
          %v1070 = vld [vmem:[#allocation2] sm:$0x3]
          %v1071 = vld [vmem:[#allocation2 + $0x2] sm:$0x3]
          %1072 = vst.msk [vmem:[#allocation14] sm:$0x3] %vm524, %v1070
          %1073 = vst.msk [vmem:[#allocation14 + $0x2] sm:$0x3] %vm524, %v1071
          %v1074 = vld [vmem:[#allocation3] sm:$0x3]
          %v1075 = vld [vmem:[#allocation3 + $0x2] sm:$0x3]
          %1076 = vst.msk [vmem:[#allocation15] sm:$0x3] %vm524, %v1074
          %1077 = vst.msk [vmem:[#allocation15 + $0x2] sm:$0x3] %vm524, %v1075
        $region76: #{tpu_custom_call.1} parent=47 // pred_fallthru
          _
        // Predicated region
        $region77: #{tpu_custom_call.1} parent=47 // pred_check
          %p1078 = pneg %p192
        $region78: #{tpu_custom_call.1} parent=47 // pred_check_branch
          %1080 = sbr.rel (%p1078) target = $region80
        $region79: #{tpu_custom_call.1} parent=47 // pred_region
          %1082 = vsyncadd [#allocation7], 0
          %s1083 = sshll.u32 [#allocation14], 4
          %s1084 = int_to_ptr.vmem [resolvable:$true] %s1083
          %s1085 = sshll.u32 %s7, 4
          %s1086 = int_to_ptr.hbm [resolvable:$true] %s1085
          %1091 = dma.vmem_to_hbm [thread:$0]  %s1084, 64, %s1086, [#allocation7], 32, 32, 2
        $region80: #{tpu_custom_call.1} parent=47 // pred_fallthru
          _
        // Predicated region
        $region81: #{tpu_custom_call.1} parent=47 // pred_check
          %p1092 = pneg %p213
        $region82: #{tpu_custom_call.1} parent=47 // pred_check_branch
          %1094 = sbr.rel (%p1092) target = $region84
        $region83: #{tpu_custom_call.1} parent=47 // pred_region
          %1096 = vsyncadd [#allocation16], 0
          %s1097 = sshll.u32 [#allocation15], 4
          %s1098 = int_to_ptr.vmem [resolvable:$true] %s1097
          %s1099 = sshll.u32 %s8, 4
          %s1100 = int_to_ptr.hbm [resolvable:$true] %s1099
          %1105 = dma.vmem_to_hbm [thread:$0]  %s1098, 64, %s1100, [#allocation16], 32, 32, 2
        $region84: #{tpu_custom_call.1} parent=47 // pred_fallthru
          _
        // Predicated region
        $region85: #{tpu_custom_call.1} parent=47 // pred_check
          %p1106 = pneg %p192
        $region86: #{tpu_custom_call.1} parent=47 // pred_check_branch
          %1108 = sbr.rel (%p1106) target = $region88
        $region87: #{tpu_custom_call.1} parent=47 // pred_region
          %1110 = dma.done [#allocation7], 64
        $region88: #{tpu_custom_call.1} parent=47 // pred_fallthru
          _
        // Predicated region
        $region89: #{tpu_custom_call.1} parent=47 // pred_check
          %p1111 = pneg %p213
        $region90: #{tpu_custom_call.1} parent=47 // pred_check_branch
          %1113 = sbr.rel (%p1111) target = $region92
        $region91: #{tpu_custom_call.1} parent=47 // pred_region
          %1115 = dma.done [#allocation16], 64
        $region92: #{tpu_custom_call.1} parent=47 // pred_fallthru
          _
      $region48: #{tpu_custom_call.1} parent=5 // pred_fallthru
        _
      %p1116 = scmp.le.s32.totalorder 2, %s22
      // Predicated region
      $region93: #{tpu_custom_call.1} parent=5 // pred_check
        %p1117 = pneg %p1116
      $region94: #{tpu_custom_call.1} parent=5 // pred_check_branch
        %1119 = sbr.rel (%p1117) target = $region96
      $region95: #{tpu_custom_call.1} parent=5 // pred_region
        %s1120 = ssub.s32 %s22, 2
      $region96: #{tpu_custom_call.1} parent=5 // pred_fallthru
        _
    $region6: #{tpu_custom_call.1} parent=1 // loop_footer
      %s26 = sadd.s32 1, %s22
    $region7: #{tpu_custom_call.1} parent=1 // loop_footer_branch
      %21 = sbr.rel target = $region3
    $region8: #{tpu_custom_call.1} parent=1 // loop_exit
      _
    %1121 = vsyncpa [#allocation6], 1
    %s1122 = scalar_lea.sflag [#allocation6], 1
    %1123 = vsyncpa %s1122, 1
    %1124 = vsyncpa [#allocation9], 1
    %1125 = vsyncpa [#allocation12], 1
    %1126 = vsyncpa [#allocation7], 1
    %s1127 = scalar_lea.sflag [#allocation7], 1
    %1128 = vsyncpa %s1127, 1
    %1129 = vsyncpa [#allocation16], 1

</llo_original>
